<compile_context>
chip_gen: v7x
topology: tpu7x:2x2x1
jax: 0.10.0
libtpu: 0.0.40
codegen_flags: <defaults>
</compile_context>

<pallas_src>
import functools

import jax
import jax.numpy as jnp
from jax import lax
from jax.experimental import pallas as pl
from jax.experimental.pallas import tpu as pltpu


def _round_up(x, m):
    return ((x + m - 1) // m) * m


_VQ_CHUNK = 256  # rows per in-kernel sub-block; keeps (CHUNK, K) temporaries near vreg-resident


# ---------------------------------------------------------------------------
# VectorQuantizer kernel
# ---------------------------------------------------------------------------
def _vq_kernel(cb_neg2T_ref, cb_sq_ref, cb_ref, z_ref, zq_ref, idx_ref, sse_ref,
               *, chunk, num_codes):
    """One (TN, D) row tile of vector quantization, natural row-major layout.

    cb_neg2T_ref : (D, K)  bf16  (-2 * codebook)^T      (resident across grid steps)
    cb_sq_ref    : (1, K)  f32   per-code ||c||^2       (resident)
    cb_ref       : (K, D)  f32   codebook               (resident, exact f32 gather)
    z_ref        : (TN, D) f32   streamed tile of input rows
    zq_ref       : (TN, D) f32   quantized rows (exact codebook rows)
    idx_ref      : (TN, 1) int32 chosen code per row
    sse_ref      : (TN, 1) f32   per-row ||z_q - z||^2
    """
    # Hoist the small resident operands out of the chunk loop (a handful of vregs).
    cb_neg2T = cb_neg2T_ref[...]
    cb_sq = cb_sq_ref[...]
    cb = cb_ref[...]
    nchunks = z_ref.shape[0] // chunk

    # Static Python loop == fully unrolled straight-line code; per-chunk temporaries die
    # at their stores, so chunking bounds register pressure (the point of the loop).
    for ci in range(nchunks):
        r0 = ci * chunk                                              # static offset
        zc = z_ref[r0:r0 + chunk, :]                                 # (C, D) f32
        # proxy = ||c||^2 - 2 z.c   (the row-constant ||z||^2 is dropped for the argmin).
        # The -2 is pre-folded into the bf16 codebook, so the MXU emits the scaled cross
        # term directly and only one broadcast add remains on the VPU.
        cross = jnp.dot(zc.astype(jnp.bfloat16), cb_neg2T,
                        preferred_element_type=jnp.float32)          # (C, K)
        proxy = cross + cb_sq                                        # (C, K)

        # First-minimum argmin over codes (codes on the lane axis -> XLU reductions).
        min_p = jnp.min(proxy, axis=1, keepdims=True)                # (C, 1)
        iota_k = lax.broadcasted_iota(jnp.int32, proxy.shape, 1)     # (C, K)
        idx = jnp.min(jnp.where(proxy <= min_p, iota_k, num_codes),
                      axis=1, keepdims=True)                         # (C, 1)

        # One-hot gather kept in f32 so z_q is exactly codebook[idx].
        onehot = (iota_k == idx).astype(jnp.float32)                 # (C, K)
        zq = jnp.dot(onehot, cb, preferred_element_type=jnp.float32)  # (C, D)

        diff = zq - zc
        sse_ref[r0:r0 + chunk, :] = jnp.sum(diff * diff, axis=1, keepdims=True)
        idx_ref[r0:r0 + chunk, :] = idx
        zq_ref[r0:r0 + chunk, :] = zq
    # TODO(synk): for num_codes >> 1024, additionally tile K with a running (min, idx)
    #             carry instead of materializing the full (C, K) proxy (required before
    #             scaling the codebook on v7x's 64 MiB VMEM).


def vector_quantizer(z, codebook, beta=1.0, tile_rows=2048):
    """Forward pass of VectorQuantizer.  z: (N, D), codebook: (K, D).

    Returns (z_q_st, vq_loss, indices); z_q_st's forward value equals z_q.
    """
    n, d = z.shape
    k, d_cb = codebook.shape
    assert d == d_cb

    # Row tiling: large tiles amortize the ~0.35us per-grid-step overhead, but cap so the
    # grid keeps >=4 steps (megacore sharding on v7x + DMA/compute overlap).  Tiles are
    # multiples of the in-kernel chunk so the chunk loop divides evenly.
    n128 = _round_up(n, 128)
    if n128 <= _VQ_CHUNK:
        tn = n128
    else:
        tn = max(_VQ_CHUNK,
                 min(_round_up(tile_rows, _VQ_CHUNK),
                     _round_up(-(-n128 // 4), _VQ_CHUNK)))
    chunk = min(_VQ_CHUNK, tn)
    num_tiles = pl.cdiv(n, tn)
    n_pad = num_tiles * tn

    z32 = z.astype(jnp.float32)
    cb32 = codebook.astype(jnp.float32)
    if n_pad != n:
        z32 = jnp.pad(z32, ((0, n_pad - n), (0, 0)))

    # Hoisted one-time codebook work: fold -2 into the bf16 distance operand (exact,
    # power-of-two scale), precompute row norms, keep an exact f32 copy for the gather.
    cb_neg2T = (-2.0 * cb32).T.astype(jnp.bfloat16)        # (D, K)
    cb_sq = jnp.sum(cb32 * cb32, axis=1)[None, :]          # (1, K)

    zq, idx_col, sse_col = pl.pallas_call(
        functools.partial(_vq_kernel, chunk=chunk, num_codes=k),
        out_shape=(
            jax.ShapeDtypeStruct((n_pad, d), jnp.float32),
            jax.ShapeDtypeStruct((n_pad, 1), jnp.int32),
            jax.ShapeDtypeStruct((n_pad, 1), jnp.float32),
        ),
        grid=(num_tiles,),
        in_specs=[
            pl.BlockSpec((d, k), lambda i: (0, 0)),        # resident (-2*codebook)^T bf16
            pl.BlockSpec((1, k), lambda i: (0, 0)),        # resident ||c||^2
            pl.BlockSpec((k, d), lambda i: (0, 0)),        # resident codebook f32 (gather)
            pl.BlockSpec((tn, d), lambda i: (i, 0)),       # streamed z tile (natural layout)
        ],
        out_specs=(
            pl.BlockSpec((tn, d), lambda i: (i, 0)),       # z_q (natural layout)
            pl.BlockSpec((tn, 1), lambda i: (i, 0)),       # indices
            pl.BlockSpec((tn, 1), lambda i: (i, 0)),       # per-row SSE partials
        ),
        compiler_params=pltpu.CompilerParams(
            dimension_semantics=("parallel",),             # shard row tiles across TCs
            vmem_limit_bytes=32 * 1024 * 1024,
        ),
    )(cb_neg2T, cb_sq, cb32, z32)

    # Padded rows carry garbage idx / z_q / sse by design: ALWAYS slice [:n] before use.
    z_q = zq[:n].astype(z.dtype)
    indices = idx_col[:n, 0]
    # codebook_loss + beta * commitment_loss == (1 + beta) * mse (forward values).
    vq_loss = (1.0 + beta) * jnp.sum(sse_col[:n, 0]) / jnp.float32(n * d)
    return z_q, vq_loss, indices


# ---------------------------------------------------------------------------
# Encoder / decoder MLPs (small: everything resident, single block)
# ---------------------------------------------------------------------------
def _mlp_kernel(*refs, num_layers):
    """Fused Linear(+ReLU between layers) stack; bf16 weights, f32 accumulation."""
    x_ref, out_ref = refs[0], refs[-1]
    h = x_ref[...]
    for layer in range(num_layers):
        w = refs[1 + 2 * layer][...]                       # (din, dout) bf16
        b = refs[2 + 2 * layer][...]                       # (1, dout)   f32
        h = jnp.dot(h.astype(jnp.bfloat16), w,
                    preferred_element_type=jnp.float32) + b
        if layer + 1 < num_layers:
            h = jnp.maximum(h, 0.0)
    out_ref[...] = h.astype(out_ref.dtype)


def mlp_forward(x, layers):
    """layers: sequence of (w: (din, dout), b: (dout,)); ReLU between layers only."""
    batch = x.shape[0]
    operands = [x]
    in_specs = [pl.BlockSpec(x.shape, lambda: (0, 0))]
    for w, b in layers:
        # Weight-bandwidth bound at small batch: stream bf16 weights (f32 MXU accumulate).
        w_bf = w.astype(jnp.bfloat16)
        b2 = b.reshape(1, -1).astype(jnp.float32)
        operands += [w_bf, b2]
        in_specs += [pl.BlockSpec(w_bf.shape, lambda: (0, 0)),
                     pl.BlockSpec(b2.shape, lambda: (0, 0))]
    out_dim = layers[-1][0].shape[1]
    # TODO(synk): tile over batch with a "parallel" grid + resident weights if the batch
    #             grows beyond ~128 rows; a single block is right at batch=8.
    return pl.pallas_call(
        functools.partial(_mlp_kernel, num_layers=len(layers)),
        out_shape=jax.ShapeDtypeStruct((batch, out_dim), x.dtype),
        in_specs=in_specs,
        out_specs=pl.BlockSpec((batch, out_dim), lambda: (0, 0)),
    )(*operands)


def vqvae_forward(x, params):
    """VQVAE.forward: (x_hat, vq_loss, rec_loss, indices)."""
    # TODO(synk): at batch=8 the three pallas_calls could be fused into one kernel so
    #             z / z_q never touch HBM at all; kept separate for modular validation.
    z = mlp_forward(x, params["encoder"])
    z_q, vq_loss, indices = vector_quantizer(z, params["codebook"], beta=params["beta"])
    x_hat = mlp_forward(z_q, params["decoder"])
    rec_loss = jnp.mean((x_hat - x) ** 2)   # scalar losses finished outside kernels
    return x_hat, vq_loss, rec_loss, indices


# ---------------------------------------------------------------------------
# Pure-JAX references / checks
# ---------------------------------------------------------------------------
def _mlp_reference(x, layers):
    """Emulates the kernel's bf16-operand / f32-accumulate matmuls."""
    h = x
    for i, (w, b) in enumerate(layers):
        h = jnp.dot(h.astype(jnp.bfloat16).astype(jnp.float32),
                    w.astype(jnp.bfloat16).astype(jnp.float32),
                    precision=jax.lax.Precision.HIGHEST) + b
        if i + 1 < len(layers):
            h = jnp.maximum(h, 0.0)
    return h


def _check_vq(z, codebook, beta, z_q, vq_loss, indices):
    n, _ = z.shape
    dist2 = jnp.sum((z[:, None, :] - codebook[None, :, :]) ** 2, axis=-1)   # (N, K)
    ref_idx = jnp.argmin(dist2, axis=1)
    ref_loss = (1.0 + beta) * jnp.mean((codebook[ref_idx] - z) ** 2)
    d_min = jnp.min(dist2, axis=1)
    d_sel = dist2[jnp.arange(n), indices]
    # Chosen codes must be numerically optimal: bf16 rounding of the cross term can flip
    # exact near-ties vs the f32 reference, but never by more than this.
    assert bool(jnp.all(d_sel <= d_min + 0.5 + 2e-2 * d_min))
    if n >= 256:
        assert float(jnp.mean((indices == ref_idx).astype(jnp.float32))) > 0.97
    # z_q must be exactly the gathered codebook rows for the chosen indices.
    assert bool(jnp.allclose(z_q, codebook[indices], atol=1e-5, rtol=1e-5))
    # Loss path: (1+beta)*mse for the chosen indices, and close to the f32 reference.
    loss_from_idx = (1.0 + beta) * jnp.mean((codebook[indices] - z) ** 2)
    assert bool(jnp.allclose(vq_loss, loss_from_idx, atol=1e-5, rtol=1e-5))
    assert bool(jnp.allclose(vq_loss, ref_loss, atol=1e-3, rtol=1e-3))


def _init_linear(key, din, dout):
    w = jax.random.normal(key, (din, dout), jnp.float32) / jnp.sqrt(jnp.float32(din))
    b = jnp.zeros((dout,), jnp.float32)
    return w, b


if __name__ == "__main__":
    root = jax.random.PRNGKey(0)
    k_z, k_z2, k_cb, k_x, k_params = jax.random.split(root, 5)

    num_codes, code_dim, beta = 128, 32, 1.0
    codebook = jax.random.normal(k_cb, (num_codes, code_dim), dtype=jnp.float32)

    # --- 1) Standalone quantizer: multi-tile grid + padded last tile --------
    n_vectors = 1000                       # not a multiple of the tile size
    z = jax.random.normal(k_z, (n_vectors, code_dim), dtype=jnp.float32)
    z_q, vq_loss, indices = vector_quantizer(z, codebook, beta=beta, tile_rows=256)
    jax.block_until_ready((z_q, vq_loss, indices))
    _check_vq(z, codebook, beta, z_q, vq_loss, indices)

    # --- 1b) Larger N: exercises the in-kernel chunk loop (tn > chunk) ------
    z_big = jax.random.normal(k_z2, (3000, code_dim), dtype=jnp.float32)
    z_qb, vq_lossb, idx_b = vector_quantizer(z_big, codebook, beta=beta)
    jax.block_until_ready((z_qb, vq_lossb, idx_b))
    _check_vq(z_big, codebook, beta, z_qb, vq_lossb, idx_b)

    # --- 2) Full VQVAE forward: encoder -> quantizer -> decoder -------------
    enc_dims = [(1024, 512), (512, 256), (256, 64), (64, 32)]
    dec_dims = [(32, 64), (64, 256), (256, 512), (512, 1024)]
    keys = jax.random.split(k_params, len(enc_dims) + len(dec_dims))
    params = {
        "encoder": [_init_linear(keys[i], *dims) for i, dims in enumerate(enc_dims)],
        "decoder": [_init_linear(keys[len(enc_dims) + i], *dims)
                    for i, dims in enumerate(dec_dims)],
        "codebook": codebook,
        "beta": beta,
    }
    # TODO(synk): VQVAE.init_codebook uses sklearn MiniBatchKMeans (training-time setup,
    #             not part of forward); synthetic codebook used instead.
    x = jax.random.normal(k_x, (8, 1024), dtype=jnp.float32)

    x_hat, vq_loss2, rec_loss, indices2 = vqvae_forward(x, params)
    jax.block_until_ready((x_hat, vq_loss2, rec_loss, indices2))

    # Compositional validation (robust to bf16 near-tie argmin flips).
    z_enc = mlp_forward(x, params["encoder"])
    assert bool(jnp.allclose(z_enc, _mlp_reference(x, params["encoder"]),
                             atol=5e-3, rtol=5e-3))
    z_q2, vq_loss_chk, idx_chk = vector_quantizer(z_enc, params["codebook"], beta=beta)
    _check_vq(z_enc, params["codebook"], beta, z_q2, vq_loss_chk, idx_chk)
    assert bool(jnp.array_equal(indices2, idx_chk))
    assert bool(jnp.allclose(vq_loss2, vq_loss_chk, atol=1e-6, rtol=1e-6))
    assert bool(jnp.allclose(x_hat, _mlp_reference(z_q2, params["decoder"]),
                             atol=5e-3, rtol=5e-3))
    assert bool(jnp.allclose(rec_loss, jnp.mean((x_hat - x) ** 2), atol=1e-6, rtol=1e-6))

    print("KERNEL_OK")
</pallas_src>

<mosaic_0001>
module attributes {stable_mosaic.version = 11 : i64} {
  func.func @_vq_kernel(%arg0: i32, %arg1: memref<32x128xbf16, #tpu.memory_space<vmem>>, %arg2: memref<1x128xf32, #tpu.memory_space<vmem>>, %arg3: memref<128x32xf32, #tpu.memory_space<vmem>>, %arg4: memref<256x32xf32, #tpu.memory_space<vmem>>, %arg5: memref<256x32xf32, #tpu.memory_space<vmem>>, %arg6: memref<256x1xi32, #tpu.memory_space<vmem>>, %arg7: memref<256x1xf32, #tpu.memory_space<vmem>>) attributes {dimension_semantics = [#tpu.dimension_semantics<parallel>], iteration_bounds = array<i64: 4>, scalar_prefetch = 0 : i64, scratch_operands = 0 : i64, tpu.core_type = #tpu.core_type<tc>, window_params = [{pipeline_mode = #tpu.pipeline_mode<synchronous>, transform_indices = @transform_0, window_bounds = array<i64: 32, 128>}, {pipeline_mode = #tpu.pipeline_mode<synchronous>, transform_indices = @transform_1, window_bounds = array<i64: 1, 128>}, {pipeline_mode = #tpu.pipeline_mode<synchronous>, transform_indices = @transform_2, window_bounds = array<i64: 128, 32>}, {transform_indices = @transform_3, window_bounds = array<i64: 256, 32>}, {transform_indices = @transform_4, window_bounds = array<i64: 256, 32>}, {transform_indices = @transform_5, window_bounds = array<i64: 256, 1>}, {transform_indices = @transform_6, window_bounds = array<i64: 256, 1>}]} {
    %c0 = arith.constant 0 : index
    %c0_0 = arith.constant 0 : index
    %0 = vector.load %arg1[%c0, %c0_0] : memref<32x128xbf16, #tpu.memory_space<vmem>>, vector<32x128xbf16>
    %c0_1 = arith.constant 0 : index
    %c0_2 = arith.constant 0 : index
    %1 = vector.load %arg2[%c0_1, %c0_2] : memref<1x128xf32, #tpu.memory_space<vmem>>, vector<1x128xf32>
    %c0_3 = arith.constant 0 : index
    %c0_4 = arith.constant 0 : index
    %2 = vector.load %arg3[%c0_3, %c0_4] : memref<128x32xf32, #tpu.memory_space<vmem>>, vector<128x32xf32>
    %c0_5 = arith.constant 0 : index
    %c0_6 = arith.constant 0 : index
    %3 = vector.load %arg4[%c0_5, %c0_6] : memref<256x32xf32, #tpu.memory_space<vmem>>, vector<256x32xf32>
    %4 = arith.truncf %3 : vector<256x32xf32> to vector<256x32xbf16>
    %cst = arith.constant dense<0.000000e+00> : vector<256x128xf32>
    %5 = tpu.matmul %4, %0, %cst {dimension_numbers = #tpu.dot_dimension_numbers<[1], [0], [0], [1], [0, 0, 1, 1], [], []>} : vector<256x32xbf16>, vector<32x128xbf16>, vector<256x128xf32> -> vector<256x128xf32>
    %6 = vector.broadcast %1 : vector<1x128xf32> to vector<256x128xf32>
    %7 = arith.addf %5, %6 : vector<256x128xf32>
    %cst_7 = arith.constant dense<0x7F800000> : vector<256xf32>
    %8 = vector.multi_reduction <minimumf>, %7, %cst_7 [1] : vector<256x128xf32> to vector<256xf32>
    %9 = vector.shape_cast %8 : vector<256xf32> to vector<256x1xf32>
    %10 = tpu.iota {dimensions = array<i32: 1>} : vector<256x128xi32>
    %11 = vector.broadcast %9 : vector<256x1xf32> to vector<256x128xf32>
    %12 = arith.cmpf ole, %7, %11 : vector<256x128xf32>
    %c128_i32 = arith.constant 128 : i32
    %13 = vector.broadcast %c128_i32 : i32 to vector<256x128xi32>
    %14 = arith.select %12, %10, %13 : vector<256x128xi1>, vector<256x128xi32>
    %cst_8 = arith.constant dense<2147483647> : vector<256xi32>
    %15 = vector.multi_reduction <minsi>, %14, %cst_8 [1] : vector<256x128xi32> to vector<256xi32>
    %16 = vector.shape_cast %15 : vector<256xi32> to vector<256x1xi32>
    %17 = vector.broadcast %16 : vector<256x1xi32> to vector<256x128xi32>
    %18 = arith.cmpi eq, %10, %17 : vector<256x128xi32>
    %19 = arith.extui %18 : vector<256x128xi1> to vector<256x128xi32>
    %20 = arith.sitofp %19 : vector<256x128xi32> to vector<256x128xf32>
    %cst_9 = arith.constant dense<0.000000e+00> : vector<256x32xf32>
    %21 = tpu.matmul %20, %2, %cst_9 {dimension_numbers = #tpu.dot_dimension_numbers<[1], [0], [0], [1], [0, 0, 1, 1], [], []>} : vector<256x128xf32>, vector<128x32xf32>, vector<256x32xf32> -> vector<256x32xf32>
    %22 = arith.subf %21, %3 : vector<256x32xf32>
    %23 = arith.mulf %22, %22 : vector<256x32xf32>
    %cst_10 = arith.constant dense<0.000000e+00> : vector<256xf32>
    %24 = vector.multi_reduction <add>, %23, %cst_10 [1] : vector<256x32xf32> to vector<256xf32>
    %25 = vector.shape_cast %24 : vector<256xf32> to vector<256x1xf32>
    %c0_11 = arith.constant 0 : index
    %c0_12 = arith.constant 0 : index
    %26 = vector.load %arg7[%c0_11, %c0_12] : memref<256x1xf32, #tpu.memory_space<vmem>>, vector<256x1xf32>
    tpu.vector_store %arg7[%c0_11, %c0_12], %25 {strides = array<i32>} : memref<256x1xf32, #tpu.memory_space<vmem>>, vector<256x1xf32>,
    %c0_13 = arith.constant 0 : index
    %c0_14 = arith.constant 0 : index
    %27 = vector.load %arg6[%c0_13, %c0_14] : memref<256x1xi32, #tpu.memory_space<vmem>>, vector<256x1xi32>
    tpu.vector_store %arg6[%c0_13, %c0_14], %16 {strides = array<i32>} : memref<256x1xi32, #tpu.memory_space<vmem>>, vector<256x1xi32>,
    %c0_15 = arith.constant 0 : index
    %c0_16 = arith.constant 0 : index
    %28 = vector.load %arg5[%c0_15, %c0_16] : memref<256x32xf32, #tpu.memory_space<vmem>>, vector<256x32xf32>
    tpu.vector_store %arg5[%c0_15, %c0_16], %21 {strides = array<i32>} : memref<256x32xf32, #tpu.memory_space<vmem>>, vector<256x32xf32>,
    return
  }
  func.func @transform_0(%arg0: i32) -> (i32, i32) {
    %c0_i32 = arith.constant 0 : i32
    %c0_i32_0 = arith.constant 0 : i32
    %c0_i32_1 = arith.constant 0 : i32
    return %c0_i32, %c0_i32_0 : i32, i32
  }
  func.func @transform_1(%arg0: i32) -> (i32, i32) {
    %c0_i32 = arith.constant 0 : i32
    %c0_i32_0 = arith.constant 0 : i32
    %c0_i32_1 = arith.constant 0 : i32
    return %c0_i32, %c0_i32_0 : i32, i32
  }
  func.func @transform_2(%arg0: i32) -> (i32, i32) {
    %c0_i32 = arith.constant 0 : i32
    %c0_i32_0 = arith.constant 0 : i32
    %c0_i32_1 = arith.constant 0 : i32
    return %c0_i32, %c0_i32_0 : i32, i32
  }
  func.func @transform_3(%arg0: i32) -> (i32, i32) {
    %c0_i32 = arith.constant 0 : i32
    %c0_i32_0 = arith.constant 0 : i32
    return %arg0, %c0_i32 : i32, i32
  }
  func.func @transform_4(%arg0: i32) -> (i32, i32) {
    %c0_i32 = arith.constant 0 : i32
    %c0_i32_0 = arith.constant 0 : i32
    return %arg0, %c0_i32 : i32, i32
  }
  func.func @transform_5(%arg0: i32) -> (i32, i32) {
    %c0_i32 = arith.constant 0 : i32
    %c0_i32_0 = arith.constant 0 : i32
    return %arg0, %c0_i32 : i32, i32
  }
  func.func @transform_6(%arg0: i32) -> (i32, i32) {
    %c0_i32 = arith.constant 0 : i32
    %c0_i32_0 = arith.constant 0 : i32
    return %arg0, %c0_i32 : i32, i32
  }
}

</mosaic_0001>

<llo_original>
// kernel: tpu_custom_call.1
$region0: #{tpu_custom_call.1}
  #allocation0 [shape = 'u32[]', space=smem, size = 0x4, offset = 0x4, fixed_abs, tag = 'smem constant byte address 0x4 - core index']
  #allocation1 [shape = 'u32[144,128]{1,0:T(1,128)}', space=vmem, size = 0x12000, scoped, tag = 'internal scratch']
  %s0 = inlined_call_operand.vmem [shape: bf16[32,128], index: 0, kind: input, shape index: {}]
  %s1 = inlined_call_operand.vmem [shape: f32[1,128], index: 1, kind: input, shape index: {}]
  %s2 = inlined_call_operand.vmem [shape: f32[128,32], index: 2, kind: input, shape index: {}]
  %s3 = inlined_call_operand.vmem [shape: f32[1024,32], index: 3, kind: input, shape index: {}]
  %s4 = inlined_call_operand.vmem [shape: f32[1024,32], index: 4, kind: output, shape index: {0}]
  %s5 = inlined_call_operand.vmem [shape: s32[1024,1], index: 5, kind: output, shape index: {1}]
  %s6 = inlined_call_operand.vmem [shape: f32[1024,1], index: 6, kind: output, shape index: {2}]
  %7 = xla_tuple %s4, %s5, %s6
  %s8 = sld [smem:[#allocation0]]
  $region65: #{tpu_custom_call.1} parent=0
    _
  %s10 = ssub.s32 1, %s8
  %s11 = scalar_select 0, %s10, %s8
  loop: start=0, step=1, limit=6
  $region2: #{tpu_custom_call.1} parent=0 // loop_pre_header
    _
  $region3: #{tpu_custom_call.1} parent=0 // loop_header
    %s13 = sphi 0, %s17
    %p14 = scmp.ge.s32.totalorder %s13, 6
    %s21 = sphi 0, %s21
    %s23 = sphi 0, %s21
    %s24 = sphi 0, %s23
    %s38 = sphi 0, %s24
    %s42 = sphi 0, %s42
    %s44 = sphi 0, %s42
    %s45 = sphi 0, %s44
    %s59 = sphi 0, %s45
    %s63 = sphi 0, %s63
    %s65 = sphi 0, %s63
    %s66 = sphi 0, %s65
    %s80 = sphi 0, %s66
    %s86 = sphi 0, %s88
    %s89 = sphi 0, %s86
    %s90 = sphi 0, %s89
    %s106 = sphi 0, %s90
    %s112 = sphi 0, %s114
    %s115 = sphi 0, %s112
    %s116 = sphi 0, %s115
    %s132 = sphi 0, %s116
    %s138 = sphi 0, %s140
    %s141 = sphi 0, %s138
    %s142 = sphi 0, %s141
    %s158 = sphi 0, %s142
    %s164 = sphi 0, %s166
    %s167 = sphi 0, %s164
    %s168 = sphi 0, %s167
    %s184 = sphi 0, %s168
  $region4: #{tpu_custom_call.1} parent=0 // loop_header_branch
    %16 = sbr.rel (%p14) target = $region8
  $region5: #{tpu_custom_call.1} parent=0 // loop_body
    %s18 = ssub.s32 %s13, 1
    %s19 = ssub.s32 %s13, 2
    %s20 = sadd.s32 %s13, 1
    %s22 = sadd.s32 %s21, 1
    %p25 = scmp.eq.s32.totalorder %s13, 3
    %p26 = scmp.ne.s32.totalorder %s21, %s23
    %p27 = scmp.eq.s32.totalorder %s13, 0
    %p28 = por %p26, %p27
    %p29 = scmp.ne.s32.totalorder %s21, %s23
    %p30 = scmp.eq.s32.totalorder %s18, 3
    %p31 = por %p29, %p30
    %p32 = scmp.ne.s32.totalorder %s23, %s24
    %p33 = scmp.eq.s32.totalorder %s18, 0
    %p34 = por %p32, %p33
    %p35 = scmp.ne.s32.totalorder %s23, %s24
    %p36 = scmp.eq.s32.totalorder %s19, 3
    %p37 = por %p35, %p36
    %p39 = scmp.ne.s32.totalorder %s24, %s38
    %p40 = scmp.eq.s32.totalorder %s19, 0
    %p41 = por %p39, %p40
    %s43 = sadd.s32 %s42, 1
    %p46 = scmp.eq.s32.totalorder %s13, 3
    %p47 = scmp.ne.s32.totalorder %s42, %s44
    %p48 = scmp.eq.s32.totalorder %s13, 0
    %p49 = por %p47, %p48
    %p50 = scmp.ne.s32.totalorder %s42, %s44
    %p51 = scmp.eq.s32.totalorder %s18, 3
    %p52 = por %p50, %p51
    %p53 = scmp.ne.s32.totalorder %s44, %s45
    %p54 = scmp.eq.s32.totalorder %s18, 0
    %p55 = por %p53, %p54
    %p56 = scmp.ne.s32.totalorder %s44, %s45
    %p57 = scmp.eq.s32.totalorder %s19, 3
    %p58 = por %p56, %p57
    %p60 = scmp.ne.s32.totalorder %s45, %s59
    %p61 = scmp.eq.s32.totalorder %s19, 0
    %p62 = por %p60, %p61
    %s64 = sadd.s32 %s63, 1
    %p67 = scmp.eq.s32.totalorder %s13, 3
    %p68 = scmp.ne.s32.totalorder %s63, %s65
    %p69 = scmp.eq.s32.totalorder %s13, 0
    %p70 = por %p68, %p69
    %p71 = scmp.ne.s32.totalorder %s63, %s65
    %p72 = scmp.eq.s32.totalorder %s18, 3
    %p73 = por %p71, %p72
    %p74 = scmp.ne.s32.totalorder %s65, %s66
    %p75 = scmp.eq.s32.totalorder %s18, 0
    %p76 = por %p74, %p75
    %p77 = scmp.ne.s32.totalorder %s65, %s66
    %p78 = scmp.eq.s32.totalorder %s19, 3
    %p79 = por %p77, %p78
    %p81 = scmp.ne.s32.totalorder %s66, %s80
    %p82 = scmp.eq.s32.totalorder %s19, 0
    %p83 = por %p81, %p82
    %s84 = ssub.s32 %s13, %s20
    %p85 = scmp.eq.s32.totalorder %s84, 0
    %s87 = sadd.s32 %s86, 1
    %s88 = scalar_select %p85, %s86, %s87
    %p91 = pneg %p85
    %p92 = scmp.eq.s32.totalorder %s13, 3
    %p93 = por %p91, %p92
    %p94 = scmp.ne.s32.totalorder %s86, %s89
    %p95 = scmp.eq.s32.totalorder %s13, 0
    %p96 = por %p94, %p95
    %p97 = scmp.ne.s32.totalorder %s86, %s89
    %p98 = scmp.eq.s32.totalorder %s18, 3
    %p99 = por %p97, %p98
    %p100 = scmp.ne.s32.totalorder %s89, %s90
    %p101 = scmp.eq.s32.totalorder %s18, 0
    %p102 = por %p100, %p101
    %p103 = scmp.ne.s32.totalorder %s89, %s90
    %p104 = scmp.eq.s32.totalorder %s19, 3
    %p105 = por %p103, %p104
    %p107 = scmp.ne.s32.totalorder %s90, %s106
    %p108 = scmp.eq.s32.totalorder %s19, 0
    %p109 = por %p107, %p108
    %s110 = ssub.s32 %s13, %s20
    %p111 = scmp.eq.s32.totalorder %s110, 0
    %s113 = sadd.s32 %s112, 1
    %s114 = scalar_select %p111, %s112, %s113
    %p117 = pneg %p111
    %p118 = scmp.eq.s32.totalorder %s13, 3
    %p119 = por %p117, %p118
    %p120 = scmp.ne.s32.totalorder %s112, %s115
    %p121 = scmp.eq.s32.totalorder %s13, 0
    %p122 = por %p120, %p121
    %p123 = scmp.ne.s32.totalorder %s112, %s115
    %p124 = scmp.eq.s32.totalorder %s18, 3
    %p125 = por %p123, %p124
    %p126 = scmp.ne.s32.totalorder %s115, %s116
    %p127 = scmp.eq.s32.totalorder %s18, 0
    %p128 = por %p126, %p127
    %p129 = scmp.ne.s32.totalorder %s115, %s116
    %p130 = scmp.eq.s32.totalorder %s19, 3
    %p131 = por %p129, %p130
    %p133 = scmp.ne.s32.totalorder %s116, %s132
    %p134 = scmp.eq.s32.totalorder %s19, 0
    %p135 = por %p133, %p134
    %s136 = ssub.s32 %s13, %s20
    %p137 = scmp.eq.s32.totalorder %s136, 0
    %s139 = sadd.s32 %s138, 1
    %s140 = scalar_select %p137, %s138, %s139
    %p143 = pneg %p137
    %p144 = scmp.eq.s32.totalorder %s13, 3
    %p145 = por %p143, %p144
    %p146 = scmp.ne.s32.totalorder %s138, %s141
    %p147 = scmp.eq.s32.totalorder %s13, 0
    %p148 = por %p146, %p147
    %p149 = scmp.ne.s32.totalorder %s138, %s141
    %p150 = scmp.eq.s32.totalorder %s18, 3
    %p151 = por %p149, %p150
    %p152 = scmp.ne.s32.totalorder %s141, %s142
    %p153 = scmp.eq.s32.totalorder %s18, 0
    %p154 = por %p152, %p153
    %p155 = scmp.ne.s32.totalorder %s141, %s142
    %p156 = scmp.eq.s32.totalorder %s19, 3
    %p157 = por %p155, %p156
    %p159 = scmp.ne.s32.totalorder %s142, %s158
    %p160 = scmp.eq.s32.totalorder %s19, 0
    %p161 = por %p159, %p160
    %s162 = ssub.s32 %s13, %s20
    %p163 = scmp.eq.s32.totalorder %s162, 0
    %s165 = sadd.s32 %s164, 1
    %s166 = scalar_select %p163, %s164, %s165
    %p169 = pneg %p163
    %p170 = scmp.eq.s32.totalorder %s13, 3
    %p171 = por %p169, %p170
    %p172 = scmp.ne.s32.totalorder %s164, %s167
    %p173 = scmp.eq.s32.totalorder %s13, 0
    %p174 = por %p172, %p173
    %p175 = scmp.ne.s32.totalorder %s164, %s167
    %p176 = scmp.eq.s32.totalorder %s18, 3
    %p177 = por %p175, %p176
    %p178 = scmp.ne.s32.totalorder %s167, %s168
    %p179 = scmp.eq.s32.totalorder %s18, 0
    %p180 = por %p178, %p179
    %p181 = scmp.ne.s32.totalorder %s167, %s168
    %p182 = scmp.eq.s32.totalorder %s19, 3
    %p183 = por %p181, %p182
    %p185 = scmp.ne.s32.totalorder %s168, %s184
    %p186 = scmp.eq.s32.totalorder %s19, 0
    %p187 = por %p185, %p186
    %p188 = scmp.le.s32.totalorder 1, %s13
    %p189 = scmp.lt.s32.totalorder %s13, 5
    %p190 = pnand %p188, %p189
    %p191 = pneg %p190
    // Predicated region
    $region9: #{tpu_custom_call.1} parent=5 // pred_check
      _
    $region10: #{tpu_custom_call.1} parent=5 // pred_check_branch
      %193 = sbr.rel (%p190) target = $region12
    $region11: #{tpu_custom_call.1} parent=5 // pred_region
      %s194 = ssub.s32 %s13, 1
      // Predicated region
      $region13: #{tpu_custom_call.1} parent=11 // pred_check
        %p195 = pneg %p34
      $region14: #{tpu_custom_call.1} parent=11 // pred_check_branch
        %197 = sbr.rel (%p195) target = $region16
      $region15: #{tpu_custom_call.1} parent=11 // pred_region
        _
      $region16: #{tpu_custom_call.1} parent=11 // pred_fallthru
        _
      // Predicated region
      $region17: #{tpu_custom_call.1} parent=11 // pred_check
        %p198 = pneg %p55
      $region18: #{tpu_custom_call.1} parent=11 // pred_check_branch
        %200 = sbr.rel (%p198) target = $region20
      $region19: #{tpu_custom_call.1} parent=11 // pred_region
        _
      $region20: #{tpu_custom_call.1} parent=11 // pred_fallthru
        _
      // Predicated region
      $region21: #{tpu_custom_call.1} parent=11 // pred_check
        %p201 = pneg %p76
      $region22: #{tpu_custom_call.1} parent=11 // pred_check_branch
        %203 = sbr.rel (%p201) target = $region24
      $region23: #{tpu_custom_call.1} parent=11 // pred_region
        _
      $region24: #{tpu_custom_call.1} parent=11 // pred_fallthru
        _
    $region12: #{tpu_custom_call.1} parent=5 // pred_fallthru
      _
    %p204 = scmp.lt.s32.totalorder %s13, 4
    // Predicated region
    $region25: #{tpu_custom_call.1} parent=5 // pred_check
      %p205 = pneg %p204
    $region26: #{tpu_custom_call.1} parent=5 // pred_check_branch
      %207 = sbr.rel (%p205) target = $region28
    $region27: #{tpu_custom_call.1} parent=5 // pred_region
      // Predicated region
      $region29: #{tpu_custom_call.1} parent=27 // pred_check
        %p208 = pneg %p96
      $region30: #{tpu_custom_call.1} parent=27 // pred_check_branch
        %210 = sbr.rel (%p208) target = $region32
      $region31: #{tpu_custom_call.1} parent=27 // pred_region
        %s211 = smul.u32 32, %s13
        %p212 = scmp.lt.s32.totalorder %s211, 127
        %s213 = scalar_select %p212, %s211, 127
        %s214 = smul.addr %s213, 8
        %s215 = scalar_lea.vmem %s3, %s214
        %s216 = smul.u32 32, %s13
      $region32: #{tpu_custom_call.1} parent=27 // pred_fallthru
        _
    $region28: #{tpu_custom_call.1} parent=5 // pred_fallthru
      _
    %p217 = scmp.le.s32.totalorder 1, %s13
    %p218 = scmp.lt.s32.totalorder %s13, 5
    %p219 = pnand %p217, %p218
    %p220 = pneg %p219
    // Predicated region
    $region33: #{tpu_custom_call.1} parent=5 // pred_check
      _
    $region34: #{tpu_custom_call.1} parent=5 // pred_check_branch
      %222 = sbr.rel (%p219) target = $region36
    $region35: #{tpu_custom_call.1} parent=5 // pred_region
      %s223 = ssub.s32 %s13, 1
      %p224 = pneg %p34
      %p225 = pneg %p31
      %p226 = pneg %p55
      %p227 = pneg %p52
      %p228 = pneg %p76
      %p229 = pneg %p73
      %s230 = smul.u32 32, %s18
      %p231 = scmp.lt.s32.totalorder %s230, 127
      %s232 = scalar_select %p231, %s230, 127
      %s233 = smul.addr %s232, 8
      %s234 = scalar_lea.vmem %s3, %s233
      %p235 = pneg %p102
      %p236 = pneg %p99
      %p237 = pneg %p128
      %p238 = pneg %p125
      %s239 = smul.u32 32, %s18
      %p240 = scmp.lt.s32.totalorder %s239, 127
      %s241 = scalar_select %p240, %s239, 127
      %s242 = smul.addr %s241, 8
      %s243 = scalar_lea.vmem %s4, %s242
      %p244 = pneg %p154
      %p245 = pneg %p151
      %s246 = smul.u32 32, %s18
      %p247 = scmp.lt.s32.totalorder %s246, 127
      %s248 = scalar_select %p247, %s246, 127
      %s249 = smul.addr %s248, 8
      %s250 = scalar_lea.vmem %s5, %s249
      %p251 = pneg %p180
      %p252 = pneg %p177
      %s253 = smul.u32 32, %s18
      %p254 = scmp.lt.s32.totalorder %s253, 127
      %s255 = scalar_select %p254, %s253, 127
      %s256 = smul.addr %s255, 8
      %s257 = scalar_lea.vmem %s6, %s256
      %s258 = smul.u32 32, %s18
      %p259 = scmp.lt.s32.totalorder %s258, 127
      %s260 = scalar_select %p259, %s258, 127
      %s261 = smul.addr %s260, 8
      %s262 = scalar_lea.vmem %s3, %s261
      %s263 = smul.u32 32, %s18
      %s264 = smul.u32 32, %s18
      %p265 = scmp.lt.s32.totalorder %s264, 127
      %s266 = scalar_select %p265, %s264, 127
      %s267 = smul.addr %s266, 8
      %s268 = scalar_lea.vmem %s4, %s267
      %s269 = smul.u32 32, %s18
      %s270 = smul.u32 32, %s18
      %p271 = scmp.lt.s32.totalorder %s270, 127
      %s272 = scalar_select %p271, %s270, 127
      %s273 = smul.addr %s272, 8
      %s274 = scalar_lea.vmem %s5, %s273
      %s275 = smul.u32 32, %s18
      %s276 = smul.u32 32, %s18
      %p277 = scmp.lt.s32.totalorder %s276, 127
      %s278 = scalar_select %p277, %s276, 127
      %s279 = smul.addr %s278, 8
      %s280 = scalar_lea.vmem %s6, %s279
      %s281 = smul.u32 32, %s18
      %v283 = vld [vmem:[%s0] sm:$0xf]
      %v284 = vld [vmem:[%s0 + $0x4] sm:$0xf]
      %v285 = vld [vmem:[%s0 + $0x8] sm:$0xf]
      %v286 = vld [vmem:[%s0 + $0xc] sm:$0xf]
      %v287 = vld [vmem:[%s1] sm:$0x1]
      %v288 = vld [vmem:[%s2] sm:$0xff]
      %v289 = vld [vmem:[%s2 + $0x8] sm:$0xff]
      %v290 = vld [vmem:[%s2 + $0x10] sm:$0xff]
      %v291 = vld [vmem:[%s2 + $0x18] sm:$0xff]
      %v292 = vld [vmem:[%s2 + $0x20] sm:$0xff]
      %v293 = vld [vmem:[%s2 + $0x28] sm:$0xff]
      %v294 = vld [vmem:[%s2 + $0x30] sm:$0xff]
      %v295 = vld [vmem:[%s2 + $0x38] sm:$0xff]
      %v296 = vld [vmem:[%s2 + $0x40] sm:$0xff]
      %v297 = vld [vmem:[%s2 + $0x48] sm:$0xff]
      %v298 = vld [vmem:[%s2 + $0x50] sm:$0xff]
      %v299 = vld [vmem:[%s2 + $0x58] sm:$0xff]
      %v300 = vld [vmem:[%s2 + $0x60] sm:$0xff]
      %v301 = vld [vmem:[%s2 + $0x68] sm:$0xff]
      %v302 = vld [vmem:[%s2 + $0x70] sm:$0xff]
      %v303 = vld [vmem:[%s2 + $0x78] sm:$0xff]
      %v304 = vld [vmem:[%s262] sm:$0xff]
      %v305 = vld [vmem:[%s262 + $0x8] sm:$0xff]
      %v306 = vld [vmem:[%s262 + $0x10] sm:$0xff]
      %v307 = vld [vmem:[%s262 + $0x18] sm:$0xff]
      %v308 = vld [vmem:[%s262 + $0x20] sm:$0xff]
      %v309 = vld [vmem:[%s262 + $0x28] sm:$0xff]
      %v310 = vld [vmem:[%s262 + $0x30] sm:$0xff]
      %v311 = vld [vmem:[%s262 + $0x38] sm:$0xff]
      %v312 = vld [vmem:[%s262 + $0x40] sm:$0xff]
      %v313 = vld [vmem:[%s262 + $0x48] sm:$0xff]
      %v314 = vld [vmem:[%s262 + $0x50] sm:$0xff]
      %v315 = vld [vmem:[%s262 + $0x58] sm:$0xff]
      %v316 = vld [vmem:[%s262 + $0x60] sm:$0xff]
      %v317 = vld [vmem:[%s262 + $0x68] sm:$0xff]
      %v318 = vld [vmem:[%s262 + $0x70] sm:$0xff]
      %v319 = vld [vmem:[%s262 + $0x78] sm:$0xff]
      %v320 = vld [vmem:[%s262 + $0x80] sm:$0xff]
      %v321 = vld [vmem:[%s262 + $0x88] sm:$0xff]
      %v322 = vld [vmem:[%s262 + $0x90] sm:$0xff]
      %v323 = vld [vmem:[%s262 + $0x98] sm:$0xff]
      %v324 = vld [vmem:[%s262 + $0xa0] sm:$0xff]
      %v325 = vld [vmem:[%s262 + $0xa8] sm:$0xff]
      %v326 = vld [vmem:[%s262 + $0xb0] sm:$0xff]
      %v327 = vld [vmem:[%s262 + $0xb8] sm:$0xff]
      %v328 = vld [vmem:[%s262 + $0xc0] sm:$0xff]
      %v329 = vld [vmem:[%s262 + $0xc8] sm:$0xff]
      %v330 = vld [vmem:[%s262 + $0xd0] sm:$0xff]
      %v331 = vld [vmem:[%s262 + $0xd8] sm:$0xff]
      %v332 = vld [vmem:[%s262 + $0xe0] sm:$0xff]
      %v333 = vld [vmem:[%s262 + $0xe8] sm:$0xff]
      %v334 = vld [vmem:[%s262 + $0xf0] sm:$0xff]
      %v335 = vld [vmem:[%s262 + $0xf8] sm:$0xff]
      %v336 = vpack.c.bf16 %v305, %v304
      %v337 = vpack.c.bf16 %v307, %v306
      %v338 = vpack.c.bf16 %v309, %v308
      %v339 = vpack.c.bf16 %v311, %v310
      %v340 = vpack.c.bf16 %v313, %v312
      %v341 = vpack.c.bf16 %v315, %v314
      %v342 = vpack.c.bf16 %v317, %v316
      %v343 = vpack.c.bf16 %v319, %v318
      %v344 = vpack.c.bf16 %v321, %v320
      %v345 = vpack.c.bf16 %v323, %v322
      %v346 = vpack.c.bf16 %v325, %v324
      %v347 = vpack.c.bf16 %v327, %v326
      %v348 = vpack.c.bf16 %v329, %v328
      %v349 = vpack.c.bf16 %v331, %v330
      %v350 = vpack.c.bf16 %v333, %v332
      %v351 = vpack.c.bf16 %v335, %v334
      %v353 = vlaneseq
      %v354 = vshrl.u32 %v353, 7
      %v355 = vsub.s32 0, %v354
      %v356 = vrot.slane %v287, %v355
      %v362 = vunpack.c.l.b16 %v283
      %v363 = vunpack.c.l.b16 %v284
      %v364 = vunpack.c.l.b16 %v285
      %v365 = vunpack.c.l.b16 %v286
      %v366 = vpack.c.b16 %v363, %v362
      %v367 = vpack.c.b16 %v365, %v364
      %vm370 = vcmask 261120
      %v372 = vsel %vm370, %v336, 0
      %v375 = vsel %vm370, %v337, 0
      %v378 = vsel %vm370, %v338, 0
      %v381 = vsel %vm370, %v339, 0
      %v384 = vsel %vm370, %v340, 0
      %v387 = vsel %vm370, %v341, 0
      %v390 = vsel %vm370, %v342, 0
      %v393 = vsel %vm370, %v343, 0
      %v396 = vsel %vm370, %v344, 0
      %v399 = vsel %vm370, %v345, 0
      %v402 = vsel %vm370, %v346, 0
      %v405 = vsel %vm370, %v347, 0
      %v408 = vsel %vm370, %v348, 0
      %v411 = vsel %vm370, %v349, 0
      %v414 = vsel %vm370, %v350, 0
      %v417 = vsel %vm370, %v351, 0
      %419 = vmatprep.subr.bf16.mxu0 0
      %420 = vmatpush1.bf16.msra.mxu0 %v366
      %421 = vmatprep.subr.bf16.mxu0 0
      %422 = vmatpush1.bf16.msra.mxu0 %v367
      %423 = vmatprep.subr.bf16.mxu0 0
      %424 = vmatpush1.bf16.msra.mxu0 0
      %425 = vmatprep.subr.bf16.mxu0 0
      %426 = vmatpush1.bf16.msra.mxu0 0
      %427 = vmatprep.subr.bf16.mxu0 0
      %428 = vmatpush1.bf16.msra.mxu0 0
      %429 = vmatprep.subr.bf16.mxu0 0
      %430 = vmatpush1.bf16.msra.mxu0 0
      %431 = vmatprep.subr.bf16.mxu0 0
      %432 = vmatpush1.bf16.msra.mxu0 0
      %433 = vmatprep.subr.bf16.mxu0 0
      %434 = vmatpush1.bf16.msra.mxu0 0
      %435 = vmatprep.subr.bf16.mxu0 0
      %436 = vmatpush1.bf16.msra.mxu0 0
      %437 = vmatprep.subr.bf16.mxu0 0
      %438 = vmatpush1.bf16.msra.mxu0 0
      %439 = vmatprep.subr.bf16.mxu0 0
      %440 = vmatpush1.bf16.msra.mxu0 0
      %441 = vmatprep.subr.bf16.mxu0 0
      %442 = vmatpush1.bf16.msra.mxu0 0
      %443 = vmatprep.subr.bf16.mxu0 0
      %444 = vmatpush1.bf16.msra.mxu0 0
      %445 = vmatprep.subr.bf16.mxu0 0
      %446 = vmatpush1.bf16.msra.mxu0 0
      %447 = vmatprep.subr.bf16.mxu0 0
      %448 = vmatpush1.bf16.msra.mxu0 0
      %449 = vmatprep.subr.bf16.mxu0 0
      %450 = vmatpush1.bf16.msra.mxu0 0
      %451 = vmatprep.mubr.bf16.mxu0 0
      %452 = vmatmul.mubr.bf16.gmra.mrb[0].mxu0 %v372
      %v453 = vpop.f32.mrb[0].mxu0
      %v454 = vadd.f32 %v356, %v453
      %v455 = vpop.f32.mrb[0].mxu0
      %v456 = vpop.f32.mrb[0].mxu0
      %v457 = vadd.f32 %v356, %v456
      %v458 = vpop.f32.mrb[0].mxu0
      %459 = vmatprep.mubr.bf16.mxu0 0
      %460 = vmatmul.mubr.bf16.gmra.mrb[0].mxu0 %v375
      %v461 = vpop.f32.mrb[0].mxu0
      %v462 = vadd.f32 %v356, %v461
      %v463 = vpop.f32.mrb[0].mxu0
      %v464 = vpop.f32.mrb[0].mxu0
      %v465 = vadd.f32 %v356, %v464
      %v466 = vpop.f32.mrb[0].mxu0
      %467 = vmatprep.mubr.bf16.mxu0 0
      %468 = vmatmul.mubr.bf16.gmra.mrb[0].mxu0 %v378
      %v469 = vpop.f32.mrb[0].mxu0
      %v470 = vadd.f32 %v356, %v469
      %v471 = vpop.f32.mrb[0].mxu0
      %v472 = vpop.f32.mrb[0].mxu0
      %v473 = vadd.f32 %v356, %v472
      %v474 = vpop.f32.mrb[0].mxu0
      %475 = vmatprep.mubr.bf16.mxu0 0
      %476 = vmatmul.mubr.bf16.gmra.mrb[0].mxu0 %v381
      %v477 = vpop.f32.mrb[0].mxu0
      %v478 = vadd.f32 %v356, %v477
      %v479 = vpop.f32.mrb[0].mxu0
      %v480 = vpop.f32.mrb[0].mxu0
      %v481 = vadd.f32 %v356, %v480
      %v482 = vpop.f32.mrb[0].mxu0
      %483 = vmatprep.mubr.bf16.mxu0 0
      %484 = vmatmul.mubr.bf16.gmra.mrb[0].mxu0 %v384
      %v485 = vpop.f32.mrb[0].mxu0
      %v486 = vadd.f32 %v356, %v485
      %v487 = vpop.f32.mrb[0].mxu0
      %v488 = vpop.f32.mrb[0].mxu0
      %v489 = vadd.f32 %v356, %v488
      %v490 = vpop.f32.mrb[0].mxu0
      %491 = vmatprep.mubr.bf16.mxu0 0
      %492 = vmatmul.mubr.bf16.gmra.mrb[0].mxu0 %v387
      %v493 = vpop.f32.mrb[0].mxu0
      %v494 = vadd.f32 %v356, %v493
      %v495 = vpop.f32.mrb[0].mxu0
      %v496 = vpop.f32.mrb[0].mxu0
      %v497 = vadd.f32 %v356, %v496
      %v498 = vpop.f32.mrb[0].mxu0
      %499 = vmatprep.mubr.bf16.mxu0 0
      %500 = vmatmul.mubr.bf16.gmra.mrb[0].mxu0 %v390
      %v501 = vpop.f32.mrb[0].mxu0
      %v502 = vadd.f32 %v356, %v501
      %v503 = vpop.f32.mrb[0].mxu0
      %v504 = vpop.f32.mrb[0].mxu0
      %v505 = vadd.f32 %v356, %v504
      %v506 = vpop.f32.mrb[0].mxu0
      %507 = vmatprep.mubr.bf16.mxu0 0
      %508 = vmatmul.mubr.bf16.gmra.mrb[0].mxu0 %v393
      %v509 = vpop.f32.mrb[0].mxu0
      %v510 = vadd.f32 %v356, %v509
      %v511 = vpop.f32.mrb[0].mxu0
      %v512 = vpop.f32.mrb[0].mxu0
      %v513 = vadd.f32 %v356, %v512
      %v514 = vpop.f32.mrb[0].mxu0
      %515 = vmatprep.mubr.bf16.mxu0 0
      %516 = vmatmul.mubr.bf16.gmra.mrb[0].mxu0 %v396
      %v517 = vpop.f32.mrb[0].mxu0
      %v518 = vadd.f32 %v356, %v517
      %v519 = vpop.f32.mrb[0].mxu0
      %v520 = vpop.f32.mrb[0].mxu0
      %v521 = vadd.f32 %v356, %v520
      %v522 = vpop.f32.mrb[0].mxu0
      %523 = vmatprep.mubr.bf16.mxu0 0
      %524 = vmatmul.mubr.bf16.gmra.mrb[0].mxu0 %v399
      %v525 = vpop.f32.mrb[0].mxu0
      %v526 = vadd.f32 %v356, %v525
      %v527 = vpop.f32.mrb[0].mxu0
      %v528 = vpop.f32.mrb[0].mxu0
      %v529 = vadd.f32 %v356, %v528
      %v530 = vpop.f32.mrb[0].mxu0
      %531 = vmatprep.mubr.bf16.mxu0 0
      %532 = vmatmul.mubr.bf16.gmra.mrb[0].mxu0 %v402
      %v533 = vpop.f32.mrb[0].mxu0
      %v534 = vadd.f32 %v356, %v533
      %v535 = vpop.f32.mrb[0].mxu0
      %v536 = vpop.f32.mrb[0].mxu0
      %v537 = vadd.f32 %v356, %v536
      %v538 = vpop.f32.mrb[0].mxu0
      %539 = vmatprep.mubr.bf16.mxu0 0
      %540 = vmatmul.mubr.bf16.gmra.mrb[0].mxu0 %v405
      %v541 = vpop.f32.mrb[0].mxu0
      %v542 = vadd.f32 %v356, %v541
      %v543 = vpop.f32.mrb[0].mxu0
      %v544 = vpop.f32.mrb[0].mxu0
      %v545 = vadd.f32 %v356, %v544
      %v546 = vpop.f32.mrb[0].mxu0
      %547 = vmatprep.mubr.bf16.mxu0 0
      %548 = vmatmul.mubr.bf16.gmra.mrb[0].mxu0 %v408
      %v549 = vpop.f32.mrb[0].mxu0
      %v550 = vadd.f32 %v356, %v549
      %v551 = vpop.f32.mrb[0].mxu0
      %v552 = vpop.f32.mrb[0].mxu0
      %v553 = vadd.f32 %v356, %v552
      %v554 = vpop.f32.mrb[0].mxu0
      %555 = vmatprep.mubr.bf16.mxu0 0
      %556 = vmatmul.mubr.bf16.gmra.mrb[0].mxu0 %v411
      %v557 = vpop.f32.mrb[0].mxu0
      %v558 = vadd.f32 %v356, %v557
      %v559 = vpop.f32.mrb[0].mxu0
      %v560 = vpop.f32.mrb[0].mxu0
      %v561 = vadd.f32 %v356, %v560
      %v562 = vpop.f32.mrb[0].mxu0
      %563 = vmatprep.mubr.bf16.mxu0 0
      %564 = vmatmul.mubr.bf16.gmra.mrb[0].mxu0 %v414
      %v565 = vpop.f32.mrb[0].mxu0
      %v566 = vadd.f32 %v356, %v565
      %v567 = vpop.f32.mrb[0].mxu0
      %v568 = vpop.f32.mrb[0].mxu0
      %v569 = vadd.f32 %v356, %v568
      %v570 = vpop.f32.mrb[0].mxu0
      %571 = vmatprep.mubr.bf16.mxu0 0
      %572 = vmatmul.mubr.bf16.gmra.mrb[0].mxu0 %v417
      %v573 = vpop.f32.mrb[0].mxu0
      %v574 = vadd.f32 %v356, %v573
      %v575 = vpop.f32.mrb[0].mxu0
      %v576 = vpop.f32.mrb[0].mxu0
      %v577 = vadd.f32 %v356, %v576
      %v578 = vpop.f32.mrb[0].mxu0
      %579 = vdwg.mxu0
      %580 = vmin.xlane.f32.xlu0 %v454
      %v581 = vpop.xlane.xlu0 %580
      %582 = vmin.xlane.f32.xlu0 %v457
      %v583 = vpop.xlane.xlu0 %582
      %584 = vmin.xlane.f32.xlu0 %v462
      %v585 = vpop.xlane.xlu0 %584
      %586 = vmin.xlane.f32.xlu0 %v465
      %v587 = vpop.xlane.xlu0 %586
      %588 = vmin.xlane.f32.xlu0 %v470
      %v589 = vpop.xlane.xlu0 %588
      %590 = vmin.xlane.f32.xlu0 %v473
      %v591 = vpop.xlane.xlu0 %590
      %592 = vmin.xlane.f32.xlu0 %v478
      %v593 = vpop.xlane.xlu0 %592
      %594 = vmin.xlane.f32.xlu0 %v481
      %v595 = vpop.xlane.xlu0 %594
      %596 = vmin.xlane.f32.xlu0 %v486
      %v597 = vpop.xlane.xlu0 %596
      %598 = vmin.xlane.f32.xlu0 %v489
      %v599 = vpop.xlane.xlu0 %598
      %600 = vmin.xlane.f32.xlu0 %v494
      %v601 = vpop.xlane.xlu0 %600
      %602 = vmin.xlane.f32.xlu0 %v497
      %v603 = vpop.xlane.xlu0 %602
      %604 = vmin.xlane.f32.xlu0 %v502
      %v605 = vpop.xlane.xlu0 %604
      %606 = vmin.xlane.f32.xlu0 %v505
      %v607 = vpop.xlane.xlu0 %606
      %608 = vmin.xlane.f32.xlu0 %v510
      %v609 = vpop.xlane.xlu0 %608
      %610 = vmin.xlane.f32.xlu0 %v513
      %v611 = vpop.xlane.xlu0 %610
      %612 = vmin.xlane.f32.xlu0 %v518
      %v613 = vpop.xlane.xlu0 %612
      %614 = vmin.xlane.f32.xlu0 %v521
      %v615 = vpop.xlane.xlu0 %614
      %616 = vmin.xlane.f32.xlu0 %v526
      %v617 = vpop.xlane.xlu0 %616
      %618 = vmin.xlane.f32.xlu0 %v529
      %v619 = vpop.xlane.xlu0 %618
      %620 = vmin.xlane.f32.xlu0 %v534
      %v621 = vpop.xlane.xlu0 %620
      %622 = vmin.xlane.f32.xlu0 %v537
      %v623 = vpop.xlane.xlu0 %622
      %624 = vmin.xlane.f32.xlu0 %v542
      %v625 = vpop.xlane.xlu0 %624
      %626 = vmin.xlane.f32.xlu0 %v545
      %v627 = vpop.xlane.xlu0 %626
      %628 = vmin.xlane.f32.xlu0 %v550
      %v629 = vpop.xlane.xlu0 %628
      %630 = vmin.xlane.f32.xlu0 %v553
      %v631 = vpop.xlane.xlu0 %630
      %632 = vmin.xlane.f32.xlu0 %v558
      %v633 = vpop.xlane.xlu0 %632
      %634 = vmin.xlane.f32.xlu0 %v561
      %v635 = vpop.xlane.xlu0 %634
      %636 = vmin.xlane.f32.xlu0 %v566
      %v637 = vpop.xlane.xlu0 %636
      %638 = vmin.xlane.f32.xlu0 %v569
      %v639 = vpop.xlane.xlu0 %638
      %640 = vmin.xlane.f32.xlu0 %v574
      %v641 = vpop.xlane.xlu0 %640
      %642 = vmin.xlane.f32.xlu0 %v577
      %v643 = vpop.xlane.xlu0 %642
      %v644 = vlaneseq
      %v645 = vand.u32 %v644, 127
      %vm646 = vcmp.le.f32.partialorder %v454, %v581
      %vm647 = vcmp.le.f32.partialorder %v457, %v583
      %vm648 = vcmp.le.f32.partialorder %v462, %v585
      %vm649 = vcmp.le.f32.partialorder %v465, %v587
      %vm650 = vcmp.le.f32.partialorder %v470, %v589
      %vm651 = vcmp.le.f32.partialorder %v473, %v591
      %vm652 = vcmp.le.f32.partialorder %v478, %v593
      %vm653 = vcmp.le.f32.partialorder %v481, %v595
      %vm654 = vcmp.le.f32.partialorder %v486, %v597
      %vm655 = vcmp.le.f32.partialorder %v489, %v599
      %vm656 = vcmp.le.f32.partialorder %v494, %v601
      %vm657 = vcmp.le.f32.partialorder %v497, %v603
      %vm658 = vcmp.le.f32.partialorder %v502, %v605
      %vm659 = vcmp.le.f32.partialorder %v505, %v607
      %vm660 = vcmp.le.f32.partialorder %v510, %v609
      %vm661 = vcmp.le.f32.partialorder %v513, %v611
      %vm662 = vcmp.le.f32.partialorder %v518, %v613
      %vm663 = vcmp.le.f32.partialorder %v521, %v615
      %vm664 = vcmp.le.f32.partialorder %v526, %v617
      %vm665 = vcmp.le.f32.partialorder %v529, %v619
      %vm666 = vcmp.le.f32.partialorder %v534, %v621
      %vm667 = vcmp.le.f32.partialorder %v537, %v623
      %vm668 = vcmp.le.f32.partialorder %v542, %v625
      %vm669 = vcmp.le.f32.partialorder %v545, %v627
      %vm670 = vcmp.le.f32.partialorder %v550, %v629
      %vm671 = vcmp.le.f32.partialorder %v553, %v631
      %vm672 = vcmp.le.f32.partialorder %v558, %v633
      %vm673 = vcmp.le.f32.partialorder %v561, %v635
      %vm674 = vcmp.le.f32.partialorder %v566, %v637
      %vm675 = vcmp.le.f32.partialorder %v569, %v639
      %vm676 = vcmp.le.f32.partialorder %v574, %v641
      %vm677 = vcmp.le.f32.partialorder %v577, %v643
      %v678 = vsel %vm646, %v645, 128
      %v679 = vsel %vm647, %v645, 128
      %v680 = vsel %vm648, %v645, 128
      %v681 = vsel %vm649, %v645, 128
      %v682 = vsel %vm650, %v645, 128
      %v683 = vsel %vm651, %v645, 128
      %v684 = vsel %vm652, %v645, 128
      %v685 = vsel %vm653, %v645, 128
      %v686 = vsel %vm654, %v645, 128
      %v687 = vsel %vm655, %v645, 128
      %v688 = vsel %vm656, %v645, 128
      %v689 = vsel %vm657, %v645, 128
      %v690 = vsel %vm658, %v645, 128
      %v691 = vsel %vm659, %v645, 128
      %v692 = vsel %vm660, %v645, 128
      %v693 = vsel %vm661, %v645, 128
      %v694 = vsel %vm662, %v645, 128
      %v695 = vsel %vm663, %v645, 128
      %v696 = vsel %vm664, %v645, 128
      %v697 = vsel %vm665, %v645, 128
      %v698 = vsel %vm666, %v645, 128
      %v699 = vsel %vm667, %v645, 128
      %v700 = vsel %vm668, %v645, 128
      %v701 = vsel %vm669, %v645, 128
      %v702 = vsel %vm670, %v645, 128
      %v703 = vsel %vm671, %v645, 128
      %v704 = vsel %vm672, %v645, 128
      %v705 = vsel %vm673, %v645, 128
      %v706 = vsel %vm674, %v645, 128
      %v707 = vsel %vm675, %v645, 128
      %v708 = vsel %vm676, %v645, 128
      %v709 = vsel %vm677, %v645, 128
      %v710 = vand.u32 %v678, 65535
      %v711 = vshra.s32 %v678, 16
      %v712 = vcvt.s32.f32 %v710
      %v713 = vcvt.s32.f32 %v711
      %714 = vmin.xlane.f32.xlu0 %v713
      %v715 = vpop.xlane.xlu0 %714
      %vm716 = vcmp.eq.f32.partialorder %v713, %v715
      %v717 = vsel %vm716, %v712, inf
      %718 = vmin.xlane.f32.xlu0 %v717
      %v719 = vpop.xlane.xlu0 %718
      %v720 = vcvt.f32.s32 %v719
      %v721 = vcvt.f32.s32 %v715
      %v722 = vshll.u32 %v721, 16
      %v723 = vadd.s32 %v722, %v720
      %v724 = vand.u32 %v679, 65535
      %v725 = vshra.s32 %v679, 16
      %v726 = vcvt.s32.f32 %v724
      %v727 = vcvt.s32.f32 %v725
      %728 = vmin.xlane.f32.xlu0 %v727
      %v729 = vpop.xlane.xlu0 %728
      %vm730 = vcmp.eq.f32.partialorder %v727, %v729
      %v731 = vsel %vm730, %v726, inf
      %732 = vmin.xlane.f32.xlu0 %v731
      %v733 = vpop.xlane.xlu0 %732
      %v734 = vcvt.f32.s32 %v733
      %v735 = vcvt.f32.s32 %v729
      %v736 = vshll.u32 %v735, 16
      %v737 = vadd.s32 %v736, %v734
      %v738 = vand.u32 %v680, 65535
      %v739 = vshra.s32 %v680, 16
      %v740 = vcvt.s32.f32 %v738
      %v741 = vcvt.s32.f32 %v739
      %742 = vmin.xlane.f32.xlu0 %v741
      %v743 = vpop.xlane.xlu0 %742
      %vm744 = vcmp.eq.f32.partialorder %v741, %v743
      %v745 = vsel %vm744, %v740, inf
      %746 = vmin.xlane.f32.xlu0 %v745
      %v747 = vpop.xlane.xlu0 %746
      %v748 = vcvt.f32.s32 %v747
      %v749 = vcvt.f32.s32 %v743
      %v750 = vshll.u32 %v749, 16
      %v751 = vadd.s32 %v750, %v748
      %v752 = vand.u32 %v681, 65535
      %v753 = vshra.s32 %v681, 16
      %v754 = vcvt.s32.f32 %v752
      %v755 = vcvt.s32.f32 %v753
      %756 = vmin.xlane.f32.xlu0 %v755
      %v757 = vpop.xlane.xlu0 %756
      %vm758 = vcmp.eq.f32.partialorder %v755, %v757
      %v759 = vsel %vm758, %v754, inf
      %760 = vmin.xlane.f32.xlu0 %v759
      %v761 = vpop.xlane.xlu0 %760
      %v762 = vcvt.f32.s32 %v761
      %v763 = vcvt.f32.s32 %v757
      %v764 = vshll.u32 %v763, 16
      %v765 = vadd.s32 %v764, %v762
      %v766 = vand.u32 %v682, 65535
      %v767 = vshra.s32 %v682, 16
      %v768 = vcvt.s32.f32 %v766
      %v769 = vcvt.s32.f32 %v767
      %770 = vmin.xlane.f32.xlu0 %v769
      %v771 = vpop.xlane.xlu0 %770
      %vm772 = vcmp.eq.f32.partialorder %v769, %v771
      %v773 = vsel %vm772, %v768, inf
      %774 = vmin.xlane.f32.xlu0 %v773
      %v775 = vpop.xlane.xlu0 %774
      %v776 = vcvt.f32.s32 %v775
      %v777 = vcvt.f32.s32 %v771
      %v778 = vshll.u32 %v777, 16
      %v779 = vadd.s32 %v778, %v776
      %v780 = vand.u32 %v683, 65535
      %v781 = vshra.s32 %v683, 16
      %v782 = vcvt.s32.f32 %v780
      %v783 = vcvt.s32.f32 %v781
      %784 = vmin.xlane.f32.xlu0 %v783
      %v785 = vpop.xlane.xlu0 %784
      %vm786 = vcmp.eq.f32.partialorder %v783, %v785
      %v787 = vsel %vm786, %v782, inf
      %788 = vmin.xlane.f32.xlu0 %v787
      %v789 = vpop.xlane.xlu0 %788
      %v790 = vcvt.f32.s32 %v789
      %v791 = vcvt.f32.s32 %v785
      %v792 = vshll.u32 %v791, 16
      %v793 = vadd.s32 %v792, %v790
      %v794 = vand.u32 %v684, 65535
      %v795 = vshra.s32 %v684, 16
      %v796 = vcvt.s32.f32 %v794
      %v797 = vcvt.s32.f32 %v795
      %798 = vmin.xlane.f32.xlu0 %v797
      %v799 = vpop.xlane.xlu0 %798
      %vm800 = vcmp.eq.f32.partialorder %v797, %v799
      %v801 = vsel %vm800, %v796, inf
      %802 = vmin.xlane.f32.xlu0 %v801
      %v803 = vpop.xlane.xlu0 %802
      %v804 = vcvt.f32.s32 %v803
      %v805 = vcvt.f32.s32 %v799
      %v806 = vshll.u32 %v805, 16
      %v807 = vadd.s32 %v806, %v804
      %v808 = vand.u32 %v685, 65535
      %v809 = vshra.s32 %v685, 16
      %v810 = vcvt.s32.f32 %v808
      %v811 = vcvt.s32.f32 %v809
      %812 = vmin.xlane.f32.xlu0 %v811
      %v813 = vpop.xlane.xlu0 %812
      %vm814 = vcmp.eq.f32.partialorder %v811, %v813
      %v815 = vsel %vm814, %v810, inf
      %816 = vmin.xlane.f32.xlu0 %v815
      %v817 = vpop.xlane.xlu0 %816
      %v818 = vcvt.f32.s32 %v817
      %v819 = vcvt.f32.s32 %v813
      %v820 = vshll.u32 %v819, 16
      %v821 = vadd.s32 %v820, %v818
      %v822 = vand.u32 %v686, 65535
      %v823 = vshra.s32 %v686, 16
      %v824 = vcvt.s32.f32 %v822
      %v825 = vcvt.s32.f32 %v823
      %826 = vmin.xlane.f32.xlu0 %v825
      %v827 = vpop.xlane.xlu0 %826
      %vm828 = vcmp.eq.f32.partialorder %v825, %v827
      %v829 = vsel %vm828, %v824, inf
      %830 = vmin.xlane.f32.xlu0 %v829
      %v831 = vpop.xlane.xlu0 %830
      %v832 = vcvt.f32.s32 %v831
      %v833 = vcvt.f32.s32 %v827
      %v834 = vshll.u32 %v833, 16
      %v835 = vadd.s32 %v834, %v832
      %v836 = vand.u32 %v687, 65535
      %v837 = vshra.s32 %v687, 16
      %v838 = vcvt.s32.f32 %v836
      %v839 = vcvt.s32.f32 %v837
      %840 = vmin.xlane.f32.xlu0 %v839
      %v841 = vpop.xlane.xlu0 %840
      %vm842 = vcmp.eq.f32.partialorder %v839, %v841
      %v843 = vsel %vm842, %v838, inf
      %844 = vmin.xlane.f32.xlu0 %v843
      %v845 = vpop.xlane.xlu0 %844
      %v846 = vcvt.f32.s32 %v845
      %v847 = vcvt.f32.s32 %v841
      %v848 = vshll.u32 %v847, 16
      %v849 = vadd.s32 %v848, %v846
      %v850 = vand.u32 %v688, 65535
      %v851 = vshra.s32 %v688, 16
      %v852 = vcvt.s32.f32 %v850
      %v853 = vcvt.s32.f32 %v851
      %854 = vmin.xlane.f32.xlu0 %v853
      %v855 = vpop.xlane.xlu0 %854
      %vm856 = vcmp.eq.f32.partialorder %v853, %v855
      %v857 = vsel %vm856, %v852, inf
      %858 = vmin.xlane.f32.xlu0 %v857
      %v859 = vpop.xlane.xlu0 %858
      %v860 = vcvt.f32.s32 %v859
      %v861 = vcvt.f32.s32 %v855
      %v862 = vshll.u32 %v861, 16
      %v863 = vadd.s32 %v862, %v860
      %v864 = vand.u32 %v689, 65535
      %v865 = vshra.s32 %v689, 16
      %v866 = vcvt.s32.f32 %v864
      %v867 = vcvt.s32.f32 %v865
      %868 = vmin.xlane.f32.xlu0 %v867
      %v869 = vpop.xlane.xlu0 %868
      %vm870 = vcmp.eq.f32.partialorder %v867, %v869
      %v871 = vsel %vm870, %v866, inf
      %872 = vmin.xlane.f32.xlu0 %v871
      %v873 = vpop.xlane.xlu0 %872
      %v874 = vcvt.f32.s32 %v873
      %v875 = vcvt.f32.s32 %v869
      %v876 = vshll.u32 %v875, 16
      %v877 = vadd.s32 %v876, %v874
      %v878 = vand.u32 %v690, 65535
      %v879 = vshra.s32 %v690, 16
      %v880 = vcvt.s32.f32 %v878
      %v881 = vcvt.s32.f32 %v879
      %882 = vmin.xlane.f32.xlu0 %v881
      %v883 = vpop.xlane.xlu0 %882
      %vm884 = vcmp.eq.f32.partialorder %v881, %v883
      %v885 = vsel %vm884, %v880, inf
      %886 = vmin.xlane.f32.xlu0 %v885
      %v887 = vpop.xlane.xlu0 %886
      %v888 = vcvt.f32.s32 %v887
      %v889 = vcvt.f32.s32 %v883
      %v890 = vshll.u32 %v889, 16
      %v891 = vadd.s32 %v890, %v888
      %v892 = vand.u32 %v691, 65535
      %v893 = vshra.s32 %v691, 16
      %v894 = vcvt.s32.f32 %v892
      %v895 = vcvt.s32.f32 %v893
      %896 = vmin.xlane.f32.xlu0 %v895
      %v897 = vpop.xlane.xlu0 %896
      %vm898 = vcmp.eq.f32.partialorder %v895, %v897
      %v899 = vsel %vm898, %v894, inf
      %900 = vmin.xlane.f32.xlu0 %v899
      %v901 = vpop.xlane.xlu0 %900
      %v902 = vcvt.f32.s32 %v901
      %v903 = vcvt.f32.s32 %v897
      %v904 = vshll.u32 %v903, 16
      %v905 = vadd.s32 %v904, %v902
      %v906 = vand.u32 %v692, 65535
      %v907 = vshra.s32 %v692, 16
      %v908 = vcvt.s32.f32 %v906
      %v909 = vcvt.s32.f32 %v907
      %910 = vmin.xlane.f32.xlu0 %v909
      %v911 = vpop.xlane.xlu0 %910
      %vm912 = vcmp.eq.f32.partialorder %v909, %v911
      %v913 = vsel %vm912, %v908, inf
      %914 = vmin.xlane.f32.xlu0 %v913
      %v915 = vpop.xlane.xlu0 %914
      %v916 = vcvt.f32.s32 %v915
      %v917 = vcvt.f32.s32 %v911
      %v918 = vshll.u32 %v917, 16
      %v919 = vadd.s32 %v918, %v916
      %v920 = vand.u32 %v693, 65535
      %v921 = vshra.s32 %v693, 16
      %v922 = vcvt.s32.f32 %v920
      %v923 = vcvt.s32.f32 %v921
      %924 = vmin.xlane.f32.xlu0 %v923
      %v925 = vpop.xlane.xlu0 %924
      %vm926 = vcmp.eq.f32.partialorder %v923, %v925
      %v927 = vsel %vm926, %v922, inf
      %928 = vmin.xlane.f32.xlu0 %v927
      %v929 = vpop.xlane.xlu0 %928
      %v930 = vcvt.f32.s32 %v929
      %v931 = vcvt.f32.s32 %v925
      %v932 = vshll.u32 %v931, 16
      %v933 = vadd.s32 %v932, %v930
      %v934 = vand.u32 %v694, 65535
      %v935 = vshra.s32 %v694, 16
      %v936 = vcvt.s32.f32 %v934
      %v937 = vcvt.s32.f32 %v935
      %938 = vmin.xlane.f32.xlu0 %v937
      %v939 = vpop.xlane.xlu0 %938
      %vm940 = vcmp.eq.f32.partialorder %v937, %v939
      %v941 = vsel %vm940, %v936, inf
      %942 = vmin.xlane.f32.xlu0 %v941
      %v943 = vpop.xlane.xlu0 %942
      %v944 = vcvt.f32.s32 %v943
      %v945 = vcvt.f32.s32 %v939
      %v946 = vshll.u32 %v945, 16
      %v947 = vadd.s32 %v946, %v944
      %v948 = vand.u32 %v695, 65535
      %v949 = vshra.s32 %v695, 16
      %v950 = vcvt.s32.f32 %v948
      %v951 = vcvt.s32.f32 %v949
      %952 = vmin.xlane.f32.xlu0 %v951
      %v953 = vpop.xlane.xlu0 %952
      %vm954 = vcmp.eq.f32.partialorder %v951, %v953
      %v955 = vsel %vm954, %v950, inf
      %956 = vmin.xlane.f32.xlu0 %v955
      %v957 = vpop.xlane.xlu0 %956
      %v958 = vcvt.f32.s32 %v957
      %v959 = vcvt.f32.s32 %v953
      %v960 = vshll.u32 %v959, 16
      %v961 = vadd.s32 %v960, %v958
      %v962 = vand.u32 %v696, 65535
      %v963 = vshra.s32 %v696, 16
      %v964 = vcvt.s32.f32 %v962
      %v965 = vcvt.s32.f32 %v963
      %966 = vmin.xlane.f32.xlu0 %v965
      %v967 = vpop.xlane.xlu0 %966
      %vm968 = vcmp.eq.f32.partialorder %v965, %v967
      %v969 = vsel %vm968, %v964, inf
      %970 = vmin.xlane.f32.xlu0 %v969
      %v971 = vpop.xlane.xlu0 %970
      %v972 = vcvt.f32.s32 %v971
      %v973 = vcvt.f32.s32 %v967
      %v974 = vshll.u32 %v973, 16
      %v975 = vadd.s32 %v974, %v972
      %v976 = vand.u32 %v697, 65535
      %v977 = vshra.s32 %v697, 16
      %v978 = vcvt.s32.f32 %v976
      %v979 = vcvt.s32.f32 %v977
      %980 = vmin.xlane.f32.xlu0 %v979
      %v981 = vpop.xlane.xlu0 %980
      %vm982 = vcmp.eq.f32.partialorder %v979, %v981
      %v983 = vsel %vm982, %v978, inf
      %984 = vmin.xlane.f32.xlu0 %v983
      %v985 = vpop.xlane.xlu0 %984
      %v986 = vcvt.f32.s32 %v985
      %v987 = vcvt.f32.s32 %v981
      %v988 = vshll.u32 %v987, 16
      %v989 = vadd.s32 %v988, %v986
      %v990 = vand.u32 %v698, 65535
      %v991 = vshra.s32 %v698, 16
      %v992 = vcvt.s32.f32 %v990
      %v993 = vcvt.s32.f32 %v991
      %994 = vmin.xlane.f32.xlu0 %v993
      %v995 = vpop.xlane.xlu0 %994
      %vm996 = vcmp.eq.f32.partialorder %v993, %v995
      %v997 = vsel %vm996, %v992, inf
      %998 = vmin.xlane.f32.xlu0 %v997
      %v999 = vpop.xlane.xlu0 %998
      %v1000 = vcvt.f32.s32 %v999
      %v1001 = vcvt.f32.s32 %v995
      %v1002 = vshll.u32 %v1001, 16
      %v1003 = vadd.s32 %v1002, %v1000
      %v1004 = vand.u32 %v699, 65535
      %v1005 = vshra.s32 %v699, 16
      %v1006 = vcvt.s32.f32 %v1004
      %v1007 = vcvt.s32.f32 %v1005
      %1008 = vmin.xlane.f32.xlu0 %v1007
      %v1009 = vpop.xlane.xlu0 %1008
      %vm1010 = vcmp.eq.f32.partialorder %v1007, %v1009
      %v1011 = vsel %vm1010, %v1006, inf
      %1012 = vmin.xlane.f32.xlu0 %v1011
      %v1013 = vpop.xlane.xlu0 %1012
      %v1014 = vcvt.f32.s32 %v1013
      %v1015 = vcvt.f32.s32 %v1009
      %v1016 = vshll.u32 %v1015, 16
      %v1017 = vadd.s32 %v1016, %v1014
      %v1018 = vand.u32 %v700, 65535
      %v1019 = vshra.s32 %v700, 16
      %v1020 = vcvt.s32.f32 %v1018
      %v1021 = vcvt.s32.f32 %v1019
      %1022 = vmin.xlane.f32.xlu0 %v1021
      %v1023 = vpop.xlane.xlu0 %1022
      %vm1024 = vcmp.eq.f32.partialorder %v1021, %v1023
      %v1025 = vsel %vm1024, %v1020, inf
      %1026 = vmin.xlane.f32.xlu0 %v1025
      %v1027 = vpop.xlane.xlu0 %1026
      %v1028 = vcvt.f32.s32 %v1027
      %v1029 = vcvt.f32.s32 %v1023
      %v1030 = vshll.u32 %v1029, 16
      %v1031 = vadd.s32 %v1030, %v1028
      %v1032 = vand.u32 %v701, 65535
      %v1033 = vshra.s32 %v701, 16
      %v1034 = vcvt.s32.f32 %v1032
      %v1035 = vcvt.s32.f32 %v1033
      %1036 = vmin.xlane.f32.xlu0 %v1035
      %v1037 = vpop.xlane.xlu0 %1036
      %vm1038 = vcmp.eq.f32.partialorder %v1035, %v1037
      %v1039 = vsel %vm1038, %v1034, inf
      %1040 = vmin.xlane.f32.xlu0 %v1039
      %v1041 = vpop.xlane.xlu0 %1040
      %v1042 = vcvt.f32.s32 %v1041
      %v1043 = vcvt.f32.s32 %v1037
      %v1044 = vshll.u32 %v1043, 16
      %v1045 = vadd.s32 %v1044, %v1042
      %v1046 = vand.u32 %v702, 65535
      %v1047 = vshra.s32 %v702, 16
      %v1048 = vcvt.s32.f32 %v1046
      %v1049 = vcvt.s32.f32 %v1047
      %1050 = vmin.xlane.f32.xlu0 %v1049
      %v1051 = vpop.xlane.xlu0 %1050
      %vm1052 = vcmp.eq.f32.partialorder %v1049, %v1051
      %v1053 = vsel %vm1052, %v1048, inf
      %1054 = vmin.xlane.f32.xlu0 %v1053
      %v1055 = vpop.xlane.xlu0 %1054
      %v1056 = vcvt.f32.s32 %v1055
      %v1057 = vcvt.f32.s32 %v1051
      %v1058 = vshll.u32 %v1057, 16
      %v1059 = vadd.s32 %v1058, %v1056
      %v1060 = vand.u32 %v703, 65535
      %v1061 = vshra.s32 %v703, 16
      %v1062 = vcvt.s32.f32 %v1060
      %v1063 = vcvt.s32.f32 %v1061
      %1064 = vmin.xlane.f32.xlu0 %v1063
      %v1065 = vpop.xlane.xlu0 %1064
      %vm1066 = vcmp.eq.f32.partialorder %v1063, %v1065
      %v1067 = vsel %vm1066, %v1062, inf
      %1068 = vmin.xlane.f32.xlu0 %v1067
      %v1069 = vpop.xlane.xlu0 %1068
      %v1070 = vcvt.f32.s32 %v1069
      %v1071 = vcvt.f32.s32 %v1065
      %v1072 = vshll.u32 %v1071, 16
      %v1073 = vadd.s32 %v1072, %v1070
      %v1074 = vand.u32 %v704, 65535
      %v1075 = vshra.s32 %v704, 16
      %v1076 = vcvt.s32.f32 %v1074
      %v1077 = vcvt.s32.f32 %v1075
      %1078 = vmin.xlane.f32.xlu0 %v1077
      %v1079 = vpop.xlane.xlu0 %1078
      %vm1080 = vcmp.eq.f32.partialorder %v1077, %v1079
      %v1081 = vsel %vm1080, %v1076, inf
      %1082 = vmin.xlane.f32.xlu0 %v1081
      %v1083 = vpop.xlane.xlu0 %1082
      %v1084 = vcvt.f32.s32 %v1083
      %v1085 = vcvt.f32.s32 %v1079
      %v1086 = vshll.u32 %v1085, 16
      %v1087 = vadd.s32 %v1086, %v1084
      %v1088 = vand.u32 %v705, 65535
      %v1089 = vshra.s32 %v705, 16
      %v1090 = vcvt.s32.f32 %v1088
      %v1091 = vcvt.s32.f32 %v1089
      %1092 = vmin.xlane.f32.xlu0 %v1091
      %v1093 = vpop.xlane.xlu0 %1092
      %vm1094 = vcmp.eq.f32.partialorder %v1091, %v1093
      %v1095 = vsel %vm1094, %v1090, inf
      %1096 = vmin.xlane.f32.xlu0 %v1095
      %v1097 = vpop.xlane.xlu0 %1096
      %v1098 = vcvt.f32.s32 %v1097
      %v1099 = vcvt.f32.s32 %v1093
      %v1100 = vshll.u32 %v1099, 16
      %v1101 = vadd.s32 %v1100, %v1098
      %v1102 = vand.u32 %v706, 65535
      %v1103 = vshra.s32 %v706, 16
      %v1104 = vcvt.s32.f32 %v1102
      %v1105 = vcvt.s32.f32 %v1103
      %1106 = vmin.xlane.f32.xlu0 %v1105
      %v1107 = vpop.xlane.xlu0 %1106
      %vm1108 = vcmp.eq.f32.partialorder %v1105, %v1107
      %v1109 = vsel %vm1108, %v1104, inf
      %1110 = vmin.xlane.f32.xlu0 %v1109
      %v1111 = vpop.xlane.xlu0 %1110
      %v1112 = vcvt.f32.s32 %v1111
      %v1113 = vcvt.f32.s32 %v1107
      %v1114 = vshll.u32 %v1113, 16
      %v1115 = vadd.s32 %v1114, %v1112
      %v1116 = vand.u32 %v707, 65535
      %v1117 = vshra.s32 %v707, 16
      %v1118 = vcvt.s32.f32 %v1116
      %v1119 = vcvt.s32.f32 %v1117
      %1120 = vmin.xlane.f32.xlu0 %v1119
      %v1121 = vpop.xlane.xlu0 %1120
      %vm1122 = vcmp.eq.f32.partialorder %v1119, %v1121
      %v1123 = vsel %vm1122, %v1118, inf
      %1124 = vmin.xlane.f32.xlu0 %v1123
      %v1125 = vpop.xlane.xlu0 %1124
      %v1126 = vcvt.f32.s32 %v1125
      %v1127 = vcvt.f32.s32 %v1121
      %v1128 = vshll.u32 %v1127, 16
      %v1129 = vadd.s32 %v1128, %v1126
      %v1130 = vand.u32 %v708, 65535
      %v1131 = vshra.s32 %v708, 16
      %v1132 = vcvt.s32.f32 %v1130
      %v1133 = vcvt.s32.f32 %v1131
      %1134 = vmin.xlane.f32.xlu0 %v1133
      %v1135 = vpop.xlane.xlu0 %1134
      %vm1136 = vcmp.eq.f32.partialorder %v1133, %v1135
      %v1137 = vsel %vm1136, %v1132, inf
      %1138 = vmin.xlane.f32.xlu0 %v1137
      %v1139 = vpop.xlane.xlu0 %1138
      %v1140 = vcvt.f32.s32 %v1139
      %v1141 = vcvt.f32.s32 %v1135
      %v1142 = vshll.u32 %v1141, 16
      %v1143 = vadd.s32 %v1142, %v1140
      %v1144 = vand.u32 %v709, 65535
      %v1145 = vshra.s32 %v709, 16
      %v1146 = vcvt.s32.f32 %v1144
      %v1147 = vcvt.s32.f32 %v1145
      %1148 = vmin.xlane.f32.xlu0 %v1147
      %v1149 = vpop.xlane.xlu0 %1148
      %vm1150 = vcmp.eq.f32.partialorder %v1147, %v1149
      %v1151 = vsel %vm1150, %v1146, inf
      %1152 = vmin.xlane.f32.xlu0 %v1151
      %v1153 = vpop.xlane.xlu0 %1152
      %v1154 = vcvt.f32.s32 %v1153
      %v1155 = vcvt.f32.s32 %v1149
      %v1156 = vshll.u32 %v1155, 16
      %v1157 = vadd.s32 %v1156, %v1154
      %vm1158 = vcmp.eq.s32.totalorder %v645, %v723
      %vm1159 = vcmp.eq.s32.totalorder %v645, %v737
      %vm1160 = vcmp.eq.s32.totalorder %v645, %v751
      %vm1161 = vcmp.eq.s32.totalorder %v645, %v765
      %vm1162 = vcmp.eq.s32.totalorder %v645, %v779
      %vm1163 = vcmp.eq.s32.totalorder %v645, %v793
      %vm1164 = vcmp.eq.s32.totalorder %v645, %v807
      %vm1165 = vcmp.eq.s32.totalorder %v645, %v821
      %vm1166 = vcmp.eq.s32.totalorder %v645, %v835
      %vm1167 = vcmp.eq.s32.totalorder %v645, %v849
      %vm1168 = vcmp.eq.s32.totalorder %v645, %v863
      %vm1169 = vcmp.eq.s32.totalorder %v645, %v877
      %vm1170 = vcmp.eq.s32.totalorder %v645, %v891
      %vm1171 = vcmp.eq.s32.totalorder %v645, %v905
      %vm1172 = vcmp.eq.s32.totalorder %v645, %v919
      %vm1173 = vcmp.eq.s32.totalorder %v645, %v933
      %vm1174 = vcmp.eq.s32.totalorder %v645, %v947
      %vm1175 = vcmp.eq.s32.totalorder %v645, %v961
      %vm1176 = vcmp.eq.s32.totalorder %v645, %v975
      %vm1177 = vcmp.eq.s32.totalorder %v645, %v989
      %vm1178 = vcmp.eq.s32.totalorder %v645, %v1003
      %vm1179 = vcmp.eq.s32.totalorder %v645, %v1017
      %vm1180 = vcmp.eq.s32.totalorder %v645, %v1031
      %vm1181 = vcmp.eq.s32.totalorder %v645, %v1045
      %vm1182 = vcmp.eq.s32.totalorder %v645, %v1059
      %vm1183 = vcmp.eq.s32.totalorder %v645, %v1073
      %vm1184 = vcmp.eq.s32.totalorder %v645, %v1087
      %vm1185 = vcmp.eq.s32.totalorder %v645, %v1101
      %vm1186 = vcmp.eq.s32.totalorder %v645, %v1115
      %vm1187 = vcmp.eq.s32.totalorder %v645, %v1129
      %vm1188 = vcmp.eq.s32.totalorder %v645, %v1143
      %vm1189 = vcmp.eq.s32.totalorder %v645, %v1157
      %v1190 = vsel %vm1158, 1, 0
      %v1191 = vsel %vm1159, 1, 0
      %v1192 = vsel %vm1160, 1, 0
      %v1193 = vsel %vm1161, 1, 0
      %v1194 = vsel %vm1162, 1, 0
      %v1195 = vsel %vm1163, 1, 0
      %v1196 = vsel %vm1164, 1, 0
      %v1197 = vsel %vm1165, 1, 0
      %v1198 = vsel %vm1166, 1, 0
      %v1199 = vsel %vm1167, 1, 0
      %v1200 = vsel %vm1168, 1, 0
      %v1201 = vsel %vm1169, 1, 0
      %v1202 = vsel %vm1170, 1, 0
      %v1203 = vsel %vm1171, 1, 0
      %v1204 = vsel %vm1172, 1, 0
      %v1205 = vsel %vm1173, 1, 0
      %v1206 = vsel %vm1174, 1, 0
      %v1207 = vsel %vm1175, 1, 0
      %v1208 = vsel %vm1176, 1, 0
      %v1209 = vsel %vm1177, 1, 0
      %v1210 = vsel %vm1178, 1, 0
      %v1211 = vsel %vm1179, 1, 0
      %v1212 = vsel %vm1180, 1, 0
      %v1213 = vsel %vm1181, 1, 0
      %v1214 = vsel %vm1182, 1, 0
      %v1215 = vsel %vm1183, 1, 0
      %v1216 = vsel %vm1184, 1, 0
      %v1217 = vsel %vm1185, 1, 0
      %v1218 = vsel %vm1186, 1, 0
      %v1219 = vsel %vm1187, 1, 0
      %v1220 = vsel %vm1188, 1, 0
      %v1221 = vsel %vm1189, 1, 0
      %v1222 = vcvt.s32.f32 %v1190
      %v1223 = vcvt.s32.f32 %v1191
      %v1224 = vcvt.s32.f32 %v1192
      %v1225 = vcvt.s32.f32 %v1193
      %v1226 = vcvt.s32.f32 %v1194
      %v1227 = vcvt.s32.f32 %v1195
      %v1228 = vcvt.s32.f32 %v1196
      %v1229 = vcvt.s32.f32 %v1197
      %v1230 = vcvt.s32.f32 %v1198
      %v1231 = vcvt.s32.f32 %v1199
      %v1232 = vcvt.s32.f32 %v1200
      %v1233 = vcvt.s32.f32 %v1201
      %v1234 = vcvt.s32.f32 %v1202
      %v1235 = vcvt.s32.f32 %v1203
      %v1236 = vcvt.s32.f32 %v1204
      %v1237 = vcvt.s32.f32 %v1205
      %v1238 = vcvt.s32.f32 %v1206
      %v1239 = vcvt.s32.f32 %v1207
      %v1240 = vcvt.s32.f32 %v1208
      %v1241 = vcvt.s32.f32 %v1209
      %v1242 = vcvt.s32.f32 %v1210
      %v1243 = vcvt.s32.f32 %v1211
      %v1244 = vcvt.s32.f32 %v1212
      %v1245 = vcvt.s32.f32 %v1213
      %v1246 = vcvt.s32.f32 %v1214
      %v1247 = vcvt.s32.f32 %v1215
      %v1248 = vcvt.s32.f32 %v1216
      %v1249 = vcvt.s32.f32 %v1217
      %v1250 = vcvt.s32.f32 %v1218
      %v1251 = vcvt.s32.f32 %v1219
      %v1252 = vcvt.s32.f32 %v1220
      %v1253 = vcvt.s32.f32 %v1221
      %1254 = vmatprep.subr.mxu0 0.0
      %1255 = vmatpush1.msra.mxu0 %v288
      %1256 = vmatprep.subr.mxu0 0.0
      %1257 = vmatpush1.msra.mxu0 %v289
      %1258 = vmatprep.subr.mxu0 0.0
      %1259 = vmatpush1.msra.mxu0 %v290
      %1260 = vmatprep.subr.mxu0 0.0
      %1261 = vmatpush1.msra.mxu0 %v291
      %1262 = vmatprep.subr.mxu0 0.0
      %1263 = vmatpush1.msra.mxu0 %v292
      %1264 = vmatprep.subr.mxu0 0.0
      %1265 = vmatpush1.msra.mxu0 %v293
      %1266 = vmatprep.subr.mxu0 0.0
      %1267 = vmatpush1.msra.mxu0 %v294
      %1268 = vmatprep.subr.mxu0 0.0
      %1269 = vmatpush1.msra.mxu0 %v295
      %1270 = vmatprep.subr.mxu0 0.0
      %1271 = vmatpush1.msra.mxu0 %v296
      %1272 = vmatprep.subr.mxu0 0.0
      %1273 = vmatpush1.msra.mxu0 %v297
      %1274 = vmatprep.subr.mxu0 0.0
      %1275 = vmatpush1.msra.mxu0 %v298
      %1276 = vmatprep.subr.mxu0 0.0
      %1277 = vmatpush1.msra.mxu0 %v299
      %1278 = vmatprep.subr.mxu0 0.0
      %1279 = vmatpush1.msra.mxu0 %v300
      %1280 = vmatprep.subr.mxu0 0.0
      %1281 = vmatpush1.msra.mxu0 %v301
      %1282 = vmatprep.subr.mxu0 0.0
      %1283 = vmatpush1.msra.mxu0 %v302
      %1284 = vmatprep.subr.mxu0 0.0
      %1285 = vmatpush1.msra.mxu0 %v303
      %1286 = vmatprep.subr.mxu0 0.0
      %1287 = vmatpush1.msra.mxu0 0.0
      %1288 = vmatprep.subr.mxu0 0.0
      %1289 = vmatpush1.msra.mxu0 0.0
      %1290 = vmatprep.subr.mxu0 0.0
      %1291 = vmatpush1.msra.mxu0 0.0
      %1292 = vmatprep.subr.mxu0 0.0
      %1293 = vmatpush1.msra.mxu0 0.0
      %1294 = vmatprep.subr.mxu0 0.0
      %1295 = vmatpush1.msra.mxu0 0.0
      %1296 = vmatprep.subr.mxu0 0.0
      %1297 = vmatpush1.msra.mxu0 0.0
      %1298 = vmatprep.subr.mxu0 0.0
      %1299 = vmatpush1.msra.mxu0 0.0
      %1300 = vmatprep.subr.mxu0 0.0
      %1301 = vmatpush1.msra.mxu0 0.0
      %1302 = vmatprep.subr.mxu0 0.0
      %1303 = vmatpush1.msra.mxu0 0.0
      %1304 = vmatprep.subr.mxu0 0.0
      %1305 = vmatpush1.msra.mxu0 0.0
      %1306 = vmatprep.subr.mxu0 0.0
      %1307 = vmatpush1.msra.mxu0 0.0
      %1308 = vmatprep.subr.mxu0 0.0
      %1309 = vmatpush1.msra.mxu0 0.0
      %1310 = vmatprep.subr.mxu0 0.0
      %1311 = vmatpush1.msra.mxu0 0.0
      %1312 = vmatprep.subr.mxu0 0.0
      %1313 = vmatpush1.msra.mxu0 0.0
      %1314 = vmatprep.subr.mxu0 0.0
      %1315 = vmatpush1.msra.mxu0 0.0
      %1316 = vmatprep.subr.mxu0 0.0
      %1317 = vmatpush1.msra.mxu0 0.0
      %1318 = vmatprep.mubr.f32.mxu0 0.0
      %1319 = vmatmul.mubr.f32.gmra.mrb[0].mxu0 %v1222
      %v1320 = vpop.f32.mrb[0].mxu0
      %v1321 = vadd.f32 0.0, %v1320
      %v1322 = vpop.f32.mrb[0].mxu0
      %1323 = vmatprep.mubr.f32.mxu0 0.0
      %1324 = vmatmul.mubr.f32.gmra.mrb[0].mxu0 %v1223
      %v1325 = vpop.f32.mrb[0].mxu0
      %v1326 = vadd.f32 0.0, %v1325
      %v1327 = vpop.f32.mrb[0].mxu0
      %1328 = vmatprep.mubr.f32.mxu0 0.0
      %1329 = vmatmul.mubr.f32.gmra.mrb[0].mxu0 %v1224
      %v1330 = vpop.f32.mrb[0].mxu0
      %v1331 = vadd.f32 0.0, %v1330
      %v1332 = vpop.f32.mrb[0].mxu0
      %1333 = vmatprep.mubr.f32.mxu0 0.0
      %1334 = vmatmul.mubr.f32.gmra.mrb[0].mxu0 %v1225
      %v1335 = vpop.f32.mrb[0].mxu0
      %v1336 = vadd.f32 0.0, %v1335
      %v1337 = vpop.f32.mrb[0].mxu0
      %1338 = vmatprep.mubr.f32.mxu0 0.0
      %1339 = vmatmul.mubr.f32.gmra.mrb[0].mxu0 %v1226
      %v1340 = vpop.f32.mrb[0].mxu0
      %v1341 = vadd.f32 0.0, %v1340
      %v1342 = vpop.f32.mrb[0].mxu0
      %1343 = vmatprep.mubr.f32.mxu0 0.0
      %1344 = vmatmul.mubr.f32.gmra.mrb[0].mxu0 %v1227
      %v1345 = vpop.f32.mrb[0].mxu0
      %v1346 = vadd.f32 0.0, %v1345
      %v1347 = vpop.f32.mrb[0].mxu0
      %1348 = vmatprep.mubr.f32.mxu0 0.0
      %1349 = vmatmul.mubr.f32.gmra.mrb[0].mxu0 %v1228
      %v1350 = vpop.f32.mrb[0].mxu0
      %v1351 = vadd.f32 0.0, %v1350
      %v1352 = vpop.f32.mrb[0].mxu0
      %1353 = vmatprep.mubr.f32.mxu0 0.0
      %1354 = vmatmul.mubr.f32.gmra.mrb[0].mxu0 %v1229
      %v1355 = vpop.f32.mrb[0].mxu0
      %v1356 = vadd.f32 0.0, %v1355
      %v1357 = vpop.f32.mrb[0].mxu0
      %1358 = vmatprep.mubr.f32.mxu0 0.0
      %1359 = vmatmul.mubr.f32.gmra.mrb[0].mxu0 %v1230
      %v1360 = vpop.f32.mrb[0].mxu0
      %v1361 = vadd.f32 0.0, %v1360
      %v1362 = vpop.f32.mrb[0].mxu0
      %1363 = vmatprep.mubr.f32.mxu0 0.0
      %1364 = vmatmul.mubr.f32.gmra.mrb[0].mxu0 %v1231
      %v1365 = vpop.f32.mrb[0].mxu0
      %v1366 = vadd.f32 0.0, %v1365
      %v1367 = vpop.f32.mrb[0].mxu0
      %1368 = vmatprep.mubr.f32.mxu0 0.0
      %1369 = vmatmul.mubr.f32.gmra.mrb[0].mxu0 %v1232
      %v1370 = vpop.f32.mrb[0].mxu0
      %v1371 = vadd.f32 0.0, %v1370
      %v1372 = vpop.f32.mrb[0].mxu0
      %1373 = vmatprep.mubr.f32.mxu0 0.0
      %1374 = vmatmul.mubr.f32.gmra.mrb[0].mxu0 %v1233
      %v1375 = vpop.f32.mrb[0].mxu0
      %v1376 = vadd.f32 0.0, %v1375
      %v1377 = vpop.f32.mrb[0].mxu0
      %1378 = vmatprep.mubr.f32.mxu0 0.0
      %1379 = vmatmul.mubr.f32.gmra.mrb[0].mxu0 %v1234
      %v1380 = vpop.f32.mrb[0].mxu0
      %v1381 = vadd.f32 0.0, %v1380
      %v1382 = vpop.f32.mrb[0].mxu0
      %1383 = vmatprep.mubr.f32.mxu0 0.0
      %1384 = vmatmul.mubr.f32.gmra.mrb[0].mxu0 %v1235
      %v1385 = vpop.f32.mrb[0].mxu0
      %v1386 = vadd.f32 0.0, %v1385
      %v1387 = vpop.f32.mrb[0].mxu0
      %1388 = vmatprep.mubr.f32.mxu0 0.0
      %1389 = vmatmul.mubr.f32.gmra.mrb[0].mxu0 %v1236
      %v1390 = vpop.f32.mrb[0].mxu0
      %v1391 = vadd.f32 0.0, %v1390
      %v1392 = vpop.f32.mrb[0].mxu0
      %1393 = vmatprep.mubr.f32.mxu0 0.0
      %1394 = vmatmul.mubr.f32.gmra.mrb[0].mxu0 %v1237
      %v1395 = vpop.f32.mrb[0].mxu0
      %v1396 = vadd.f32 0.0, %v1395
      %v1397 = vpop.f32.mrb[0].mxu0
      %1398 = vmatprep.mubr.f32.mxu0 0.0
      %1399 = vmatmul.mubr.f32.gmra.mrb[0].mxu0 %v1238
      %v1400 = vpop.f32.mrb[0].mxu0
      %v1401 = vadd.f32 0.0, %v1400
      %v1402 = vpop.f32.mrb[0].mxu0
      %1403 = vmatprep.mubr.f32.mxu0 0.0
      %1404 = vmatmul.mubr.f32.gmra.mrb[0].mxu0 %v1239
      %v1405 = vpop.f32.mrb[0].mxu0
      %v1406 = vadd.f32 0.0, %v1405
      %v1407 = vpop.f32.mrb[0].mxu0
      %1408 = vmatprep.mubr.f32.mxu0 0.0
      %1409 = vmatmul.mubr.f32.gmra.mrb[0].mxu0 %v1240
      %v1410 = vpop.f32.mrb[0].mxu0
      %v1411 = vadd.f32 0.0, %v1410
      %v1412 = vpop.f32.mrb[0].mxu0
      %1413 = vmatprep.mubr.f32.mxu0 0.0
      %1414 = vmatmul.mubr.f32.gmra.mrb[0].mxu0 %v1241
      %v1415 = vpop.f32.mrb[0].mxu0
      %v1416 = vadd.f32 0.0, %v1415
      %v1417 = vpop.f32.mrb[0].mxu0
      %1418 = vmatprep.mubr.f32.mxu0 0.0
      %1419 = vmatmul.mubr.f32.gmra.mrb[0].mxu0 %v1242
      %v1420 = vpop.f32.mrb[0].mxu0
      %v1421 = vadd.f32 0.0, %v1420
      %v1422 = vpop.f32.mrb[0].mxu0
      %1423 = vmatprep.mubr.f32.mxu0 0.0
      %1424 = vmatmul.mubr.f32.gmra.mrb[0].mxu0 %v1243
      %v1425 = vpop.f32.mrb[0].mxu0
      %v1426 = vadd.f32 0.0, %v1425
      %v1427 = vpop.f32.mrb[0].mxu0
      %1428 = vmatprep.mubr.f32.mxu0 0.0
      %1429 = vmatmul.mubr.f32.gmra.mrb[0].mxu0 %v1244
      %v1430 = vpop.f32.mrb[0].mxu0
      %v1431 = vadd.f32 0.0, %v1430
      %v1432 = vpop.f32.mrb[0].mxu0
      %1433 = vmatprep.mubr.f32.mxu0 0.0
      %1434 = vmatmul.mubr.f32.gmra.mrb[0].mxu0 %v1245
      %v1435 = vpop.f32.mrb[0].mxu0
      %v1436 = vadd.f32 0.0, %v1435
      %v1437 = vpop.f32.mrb[0].mxu0
      %1438 = vmatprep.mubr.f32.mxu0 0.0
      %1439 = vmatmul.mubr.f32.gmra.mrb[0].mxu0 %v1246
      %v1440 = vpop.f32.mrb[0].mxu0
      %v1441 = vadd.f32 0.0, %v1440
      %v1442 = vpop.f32.mrb[0].mxu0
      %1443 = vmatprep.mubr.f32.mxu0 0.0
      %1444 = vmatmul.mubr.f32.gmra.mrb[0].mxu0 %v1247
      %v1445 = vpop.f32.mrb[0].mxu0
      %v1446 = vadd.f32 0.0, %v1445
      %v1447 = vpop.f32.mrb[0].mxu0
      %1448 = vmatprep.mubr.f32.mxu0 0.0
      %1449 = vmatmul.mubr.f32.gmra.mrb[0].mxu0 %v1248
      %v1450 = vpop.f32.mrb[0].mxu0
      %v1451 = vadd.f32 0.0, %v1450
      %v1452 = vpop.f32.mrb[0].mxu0
      %1453 = vmatprep.mubr.f32.mxu0 0.0
      %1454 = vmatmul.mubr.f32.gmra.mrb[0].mxu0 %v1249
      %v1455 = vpop.f32.mrb[0].mxu0
      %v1456 = vadd.f32 0.0, %v1455
      %v1457 = vpop.f32.mrb[0].mxu0
      %1458 = vmatprep.mubr.f32.mxu0 0.0
      %1459 = vmatmul.mubr.f32.gmra.mrb[0].mxu0 %v1250
      %v1460 = vpop.f32.mrb[0].mxu0
      %v1461 = vadd.f32 0.0, %v1460
      %v1462 = vpop.f32.mrb[0].mxu0
      %1463 = vmatprep.mubr.f32.mxu0 0.0
      %1464 = vmatmul.mubr.f32.gmra.mrb[0].mxu0 %v1251
      %v1465 = vpop.f32.mrb[0].mxu0
      %v1466 = vadd.f32 0.0, %v1465
      %v1467 = vpop.f32.mrb[0].mxu0
      %1468 = vmatprep.mubr.f32.mxu0 0.0
      %1469 = vmatmul.mubr.f32.gmra.mrb[0].mxu0 %v1252
      %v1470 = vpop.f32.mrb[0].mxu0
      %v1471 = vadd.f32 0.0, %v1470
      %v1472 = vpop.f32.mrb[0].mxu0
      %1473 = vmatprep.mubr.f32.mxu0 0.0
      %1474 = vmatmul.mubr.f32.gmra.mrb[0].mxu0 %v1253
      %v1475 = vpop.f32.mrb[0].mxu0
      %v1476 = vadd.f32 0.0, %v1475
      %v1477 = vpop.f32.mrb[0].mxu0
      %1478 = vdwg.mxu0
      %v1479 = vsub.f32 %v1321, %v304
      %v1480 = vsub.f32 %v1326, %v305
      %v1481 = vsub.f32 %v1331, %v306
      %v1482 = vsub.f32 %v1336, %v307
      %v1483 = vsub.f32 %v1341, %v308
      %v1484 = vsub.f32 %v1346, %v309
      %v1485 = vsub.f32 %v1351, %v310
      %v1486 = vsub.f32 %v1356, %v311
      %v1487 = vsub.f32 %v1361, %v312
      %v1488 = vsub.f32 %v1366, %v313
      %v1489 = vsub.f32 %v1371, %v314
      %v1490 = vsub.f32 %v1376, %v315
      %v1491 = vsub.f32 %v1381, %v316
      %v1492 = vsub.f32 %v1386, %v317
      %v1493 = vsub.f32 %v1391, %v318
      %v1494 = vsub.f32 %v1396, %v319
      %v1495 = vsub.f32 %v1401, %v320
      %v1496 = vsub.f32 %v1406, %v321
      %v1497 = vsub.f32 %v1411, %v322
      %v1498 = vsub.f32 %v1416, %v323
      %v1499 = vsub.f32 %v1421, %v324
      %v1500 = vsub.f32 %v1426, %v325
      %v1501 = vsub.f32 %v1431, %v326
      %v1502 = vsub.f32 %v1436, %v327
      %v1503 = vsub.f32 %v1441, %v328
      %v1504 = vsub.f32 %v1446, %v329
      %v1505 = vsub.f32 %v1451, %v330
      %v1506 = vsub.f32 %v1456, %v331
      %v1507 = vsub.f32 %v1461, %v332
      %v1508 = vsub.f32 %v1466, %v333
      %v1509 = vsub.f32 %v1471, %v334
      %v1510 = vsub.f32 %v1476, %v335
      %v1511 = vmul.f32 %v1479, %v1479
      %v1512 = vmul.f32 %v1480, %v1480
      %v1513 = vmul.f32 %v1481, %v1481
      %v1514 = vmul.f32 %v1482, %v1482
      %v1515 = vmul.f32 %v1483, %v1483
      %v1516 = vmul.f32 %v1484, %v1484
      %v1517 = vmul.f32 %v1485, %v1485
      %v1518 = vmul.f32 %v1486, %v1486
      %v1519 = vmul.f32 %v1487, %v1487
      %v1520 = vmul.f32 %v1488, %v1488
      %v1521 = vmul.f32 %v1489, %v1489
      %v1522 = vmul.f32 %v1490, %v1490
      %v1523 = vmul.f32 %v1491, %v1491
      %v1524 = vmul.f32 %v1492, %v1492
      %v1525 = vmul.f32 %v1493, %v1493
      %v1526 = vmul.f32 %v1494, %v1494
      %v1527 = vmul.f32 %v1495, %v1495
      %v1528 = vmul.f32 %v1496, %v1496
      %v1529 = vmul.f32 %v1497, %v1497
      %v1530 = vmul.f32 %v1498, %v1498
      %v1531 = vmul.f32 %v1499, %v1499
      %v1532 = vmul.f32 %v1500, %v1500
      %v1533 = vmul.f32 %v1501, %v1501
      %v1534 = vmul.f32 %v1502, %v1502
      %v1535 = vmul.f32 %v1503, %v1503
      %v1536 = vmul.f32 %v1504, %v1504
      %v1537 = vmul.f32 %v1505, %v1505
      %v1538 = vmul.f32 %v1506, %v1506
      %v1539 = vmul.f32 %v1507, %v1507
      %v1540 = vmul.f32 %v1508, %v1508
      %v1541 = vmul.f32 %v1509, %v1509
      %v1542 = vmul.f32 %v1510, %v1510
      %v1543 = vsel %vm370, %v1511, 0.0
      %1544 = vadd.xlane.f32.xlu0 %v1543
      %v1545 = vpop.xlane.xlu0 %1544
      %v1546 = vsel %vm370, %v1512, 0.0
      %1547 = vadd.xlane.f32.xlu0 %v1546
      %v1548 = vpop.xlane.xlu0 %1547
      %v1549 = vsel %vm370, %v1513, 0.0
      %1550 = vadd.xlane.f32.xlu0 %v1549
      %v1551 = vpop.xlane.xlu0 %1550
      %v1552 = vsel %vm370, %v1514, 0.0
      %1553 = vadd.xlane.f32.xlu0 %v1552
      %v1554 = vpop.xlane.xlu0 %1553
      %v1555 = vsel %vm370, %v1515, 0.0
      %1556 = vadd.xlane.f32.xlu0 %v1555
      %v1557 = vpop.xlane.xlu0 %1556
      %v1558 = vsel %vm370, %v1516, 0.0
      %1559 = vadd.xlane.f32.xlu0 %v1558
      %v1560 = vpop.xlane.xlu0 %1559
      %v1561 = vsel %vm370, %v1517, 0.0
      %1562 = vadd.xlane.f32.xlu0 %v1561
      %v1563 = vpop.xlane.xlu0 %1562
      %v1564 = vsel %vm370, %v1518, 0.0
      %1565 = vadd.xlane.f32.xlu0 %v1564
      %v1566 = vpop.xlane.xlu0 %1565
      %v1567 = vsel %vm370, %v1519, 0.0
      %1568 = vadd.xlane.f32.xlu0 %v1567
      %v1569 = vpop.xlane.xlu0 %1568
      %v1570 = vsel %vm370, %v1520, 0.0
      %1571 = vadd.xlane.f32.xlu0 %v1570
      %v1572 = vpop.xlane.xlu0 %1571
      %v1573 = vsel %vm370, %v1521, 0.0
      %1574 = vadd.xlane.f32.xlu0 %v1573
      %v1575 = vpop.xlane.xlu0 %1574
      %v1576 = vsel %vm370, %v1522, 0.0
      %1577 = vadd.xlane.f32.xlu0 %v1576
      %v1578 = vpop.xlane.xlu0 %1577
      %v1579 = vsel %vm370, %v1523, 0.0
      %1580 = vadd.xlane.f32.xlu0 %v1579
      %v1581 = vpop.xlane.xlu0 %1580
      %v1582 = vsel %vm370, %v1524, 0.0
      %1583 = vadd.xlane.f32.xlu0 %v1582
      %v1584 = vpop.xlane.xlu0 %1583
      %v1585 = vsel %vm370, %v1525, 0.0
      %1586 = vadd.xlane.f32.xlu0 %v1585
      %v1587 = vpop.xlane.xlu0 %1586
      %v1588 = vsel %vm370, %v1526, 0.0
      %1589 = vadd.xlane.f32.xlu0 %v1588
      %v1590 = vpop.xlane.xlu0 %1589
      %v1591 = vsel %vm370, %v1527, 0.0
      %1592 = vadd.xlane.f32.xlu0 %v1591
      %v1593 = vpop.xlane.xlu0 %1592
      %v1594 = vsel %vm370, %v1528, 0.0
      %1595 = vadd.xlane.f32.xlu0 %v1594
      %v1596 = vpop.xlane.xlu0 %1595
      %v1597 = vsel %vm370, %v1529, 0.0
      %1598 = vadd.xlane.f32.xlu0 %v1597
      %v1599 = vpop.xlane.xlu0 %1598
      %v1600 = vsel %vm370, %v1530, 0.0
      %1601 = vadd.xlane.f32.xlu0 %v1600
      %v1602 = vpop.xlane.xlu0 %1601
      %v1603 = vsel %vm370, %v1531, 0.0
      %1604 = vadd.xlane.f32.xlu0 %v1603
      %v1605 = vpop.xlane.xlu0 %1604
      %v1606 = vsel %vm370, %v1532, 0.0
      %1607 = vadd.xlane.f32.xlu0 %v1606
      %v1608 = vpop.xlane.xlu0 %1607
      %v1609 = vsel %vm370, %v1533, 0.0
      %1610 = vadd.xlane.f32.xlu0 %v1609
      %v1611 = vpop.xlane.xlu0 %1610
      %v1612 = vsel %vm370, %v1534, 0.0
      %1613 = vadd.xlane.f32.xlu0 %v1612
      %v1614 = vpop.xlane.xlu0 %1613
      %v1615 = vsel %vm370, %v1535, 0.0
      %1616 = vadd.xlane.f32.xlu0 %v1615
      %v1617 = vpop.xlane.xlu0 %1616
      %v1618 = vsel %vm370, %v1536, 0.0
      %1619 = vadd.xlane.f32.xlu0 %v1618
      %v1620 = vpop.xlane.xlu0 %1619
      %v1621 = vsel %vm370, %v1537, 0.0
      %1622 = vadd.xlane.f32.xlu0 %v1621
      %v1623 = vpop.xlane.xlu0 %1622
      %v1624 = vsel %vm370, %v1538, 0.0
      %1625 = vadd.xlane.f32.xlu0 %v1624
      %v1626 = vpop.xlane.xlu0 %1625
      %v1627 = vsel %vm370, %v1539, 0.0
      %1628 = vadd.xlane.f32.xlu0 %v1627
      %v1629 = vpop.xlane.xlu0 %1628
      %v1630 = vsel %vm370, %v1540, 0.0
      %1631 = vadd.xlane.f32.xlu0 %v1630
      %v1632 = vpop.xlane.xlu0 %1631
      %v1633 = vsel %vm370, %v1541, 0.0
      %1634 = vadd.xlane.f32.xlu0 %v1633
      %v1635 = vpop.xlane.xlu0 %1634
      %v1636 = vsel %vm370, %v1542, 0.0
      %1637 = vadd.xlane.f32.xlu0 %v1636
      %v1638 = vpop.xlane.xlu0 %1637
      %vm1639 = vcmask 7168
      %1640 = vst.msk [vmem:[%s280] sm:$0xff] %vm1639, %v1545
      %1641 = vst.msk [vmem:[%s280 + $0x8] sm:$0xff] %vm1639, %v1548
      %1642 = vst.msk [vmem:[%s280 + $0x10] sm:$0xff] %vm1639, %v1551
      %1643 = vst.msk [vmem:[%s280 + $0x18] sm:$0xff] %vm1639, %v1554
      %1644 = vst.msk [vmem:[%s280 + $0x20] sm:$0xff] %vm1639, %v1557
      %1645 = vst.msk [vmem:[%s280 + $0x28] sm:$0xff] %vm1639, %v1560
      %1646 = vst.msk [vmem:[%s280 + $0x30] sm:$0xff] %vm1639, %v1563
      %1647 = vst.msk [vmem:[%s280 + $0x38] sm:$0xff] %vm1639, %v1566
      %1648 = vst.msk [vmem:[%s280 + $0x40] sm:$0xff] %vm1639, %v1569
      %1649 = vst.msk [vmem:[%s280 + $0x48] sm:$0xff] %vm1639, %v1572
      %1650 = vst.msk [vmem:[%s280 + $0x50] sm:$0xff] %vm1639, %v1575
      %1651 = vst.msk [vmem:[%s280 + $0x58] sm:$0xff] %vm1639, %v1578
      %1652 = vst.msk [vmem:[%s280 + $0x60] sm:$0xff] %vm1639, %v1581
      %1653 = vst.msk [vmem:[%s280 + $0x68] sm:$0xff] %vm1639, %v1584
      %1654 = vst.msk [vmem:[%s280 + $0x70] sm:$0xff] %vm1639, %v1587
      %1655 = vst.msk [vmem:[%s280 + $0x78] sm:$0xff] %vm1639, %v1590
      %1656 = vst.msk [vmem:[%s280 + $0x80] sm:$0xff] %vm1639, %v1593
      %1657 = vst.msk [vmem:[%s280 + $0x88] sm:$0xff] %vm1639, %v1596
      %1658 = vst.msk [vmem:[%s280 + $0x90] sm:$0xff] %vm1639, %v1599
      %1659 = vst.msk [vmem:[%s280 + $0x98] sm:$0xff] %vm1639, %v1602
      %1660 = vst.msk [vmem:[%s280 + $0xa0] sm:$0xff] %vm1639, %v1605
      %1661 = vst.msk [vmem:[%s280 + $0xa8] sm:$0xff] %vm1639, %v1608
      %1662 = vst.msk [vmem:[%s280 + $0xb0] sm:$0xff] %vm1639, %v1611
      %1663 = vst.msk [vmem:[%s280 + $0xb8] sm:$0xff] %vm1639, %v1614
      %1664 = vst.msk [vmem:[%s280 + $0xc0] sm:$0xff] %vm1639, %v1617
      %1665 = vst.msk [vmem:[%s280 + $0xc8] sm:$0xff] %vm1639, %v1620
      %1666 = vst.msk [vmem:[%s280 + $0xd0] sm:$0xff] %vm1639, %v1623
      %1667 = vst.msk [vmem:[%s280 + $0xd8] sm:$0xff] %vm1639, %v1626
      %1668 = vst.msk [vmem:[%s280 + $0xe0] sm:$0xff] %vm1639, %v1629
      %1669 = vst.msk [vmem:[%s280 + $0xe8] sm:$0xff] %vm1639, %v1632
      %1670 = vst.msk [vmem:[%s280 + $0xf0] sm:$0xff] %vm1639, %v1635
      %1671 = vst.msk [vmem:[%s280 + $0xf8] sm:$0xff] %vm1639, %v1638
      %1672 = vst.msk [vmem:[%s274] sm:$0xff] %vm1639, %v723
      %1673 = vst.msk [vmem:[%s274 + $0x8] sm:$0xff] %vm1639, %v737
      %1674 = vst.msk [vmem:[%s274 + $0x10] sm:$0xff] %vm1639, %v751
      %1675 = vst.msk [vmem:[%s274 + $0x18] sm:$0xff] %vm1639, %v765
      %1676 = vst.msk [vmem:[%s274 + $0x20] sm:$0xff] %vm1639, %v779
      %1677 = vst.msk [vmem:[%s274 + $0x28] sm:$0xff] %vm1639, %v793
      %1678 = vst.msk [vmem:[%s274 + $0x30] sm:$0xff] %vm1639, %v807
      %1679 = vst.msk [vmem:[%s274 + $0x38] sm:$0xff] %vm1639, %v821
      %1680 = vst.msk [vmem:[%s274 + $0x40] sm:$0xff] %vm1639, %v835
      %1681 = vst.msk [vmem:[%s274 + $0x48] sm:$0xff] %vm1639, %v849
      %1682 = vst.msk [vmem:[%s274 + $0x50] sm:$0xff] %vm1639, %v863
      %1683 = vst.msk [vmem:[%s274 + $0x58] sm:$0xff] %vm1639, %v877
      %1684 = vst.msk [vmem:[%s274 + $0x60] sm:$0xff] %vm1639, %v891
      %1685 = vst.msk [vmem:[%s274 + $0x68] sm:$0xff] %vm1639, %v905
      %1686 = vst.msk [vmem:[%s274 + $0x70] sm:$0xff] %vm1639, %v919
      %1687 = vst.msk [vmem:[%s274 + $0x78] sm:$0xff] %vm1639, %v933
      %1688 = vst.msk [vmem:[%s274 + $0x80] sm:$0xff] %vm1639, %v947
      %1689 = vst.msk [vmem:[%s274 + $0x88] sm:$0xff] %vm1639, %v961
      %1690 = vst.msk [vmem:[%s274 + $0x90] sm:$0xff] %vm1639, %v975
      %1691 = vst.msk [vmem:[%s274 + $0x98] sm:$0xff] %vm1639, %v989
      %1692 = vst.msk [vmem:[%s274 + $0xa0] sm:$0xff] %vm1639, %v1003
      %1693 = vst.msk [vmem:[%s274 + $0xa8] sm:$0xff] %vm1639, %v1017
      %1694 = vst.msk [vmem:[%s274 + $0xb0] sm:$0xff] %vm1639, %v1031
      %1695 = vst.msk [vmem:[%s274 + $0xb8] sm:$0xff] %vm1639, %v1045
      %1696 = vst.msk [vmem:[%s274 + $0xc0] sm:$0xff] %vm1639, %v1059
      %1697 = vst.msk [vmem:[%s274 + $0xc8] sm:$0xff] %vm1639, %v1073
      %1698 = vst.msk [vmem:[%s274 + $0xd0] sm:$0xff] %vm1639, %v1087
      %1699 = vst.msk [vmem:[%s274 + $0xd8] sm:$0xff] %vm1639, %v1101
      %1700 = vst.msk [vmem:[%s274 + $0xe0] sm:$0xff] %vm1639, %v1115
      %1701 = vst.msk [vmem:[%s274 + $0xe8] sm:$0xff] %vm1639, %v1129
      %1702 = vst.msk [vmem:[%s274 + $0xf0] sm:$0xff] %vm1639, %v1143
      %1703 = vst.msk [vmem:[%s274 + $0xf8] sm:$0xff] %vm1639, %v1157
      %1704 = vst.msk [vmem:[%s268] sm:$0xff] %vm370, %v1321
      %1705 = vst.msk [vmem:[%s268 + $0x8] sm:$0xff] %vm370, %v1326
      %1706 = vst.msk [vmem:[%s268 + $0x10] sm:$0xff] %vm370, %v1331
      %1707 = vst.msk [vmem:[%s268 + $0x18] sm:$0xff] %vm370, %v1336
      %1708 = vst.msk [vmem:[%s268 + $0x20] sm:$0xff] %vm370, %v1341
      %1709 = vst.msk [vmem:[%s268 + $0x28] sm:$0xff] %vm370, %v1346
      %1710 = vst.msk [vmem:[%s268 + $0x30] sm:$0xff] %vm370, %v1351
      %1711 = vst.msk [vmem:[%s268 + $0x38] sm:$0xff] %vm370, %v1356
      %1712 = vst.msk [vmem:[%s268 + $0x40] sm:$0xff] %vm370, %v1361
      %1713 = vst.msk [vmem:[%s268 + $0x48] sm:$0xff] %vm370, %v1366
      %1714 = vst.msk [vmem:[%s268 + $0x50] sm:$0xff] %vm370, %v1371
      %1715 = vst.msk [vmem:[%s268 + $0x58] sm:$0xff] %vm370, %v1376
      %1716 = vst.msk [vmem:[%s268 + $0x60] sm:$0xff] %vm370, %v1381
      %1717 = vst.msk [vmem:[%s268 + $0x68] sm:$0xff] %vm370, %v1386
      %1718 = vst.msk [vmem:[%s268 + $0x70] sm:$0xff] %vm370, %v1391
      %1719 = vst.msk [vmem:[%s268 + $0x78] sm:$0xff] %vm370, %v1396
      %1720 = vst.msk [vmem:[%s268 + $0x80] sm:$0xff] %vm370, %v1401
      %1721 = vst.msk [vmem:[%s268 + $0x88] sm:$0xff] %vm370, %v1406
      %1722 = vst.msk [vmem:[%s268 + $0x90] sm:$0xff] %vm370, %v1411
      %1723 = vst.msk [vmem:[%s268 + $0x98] sm:$0xff] %vm370, %v1416
      %1724 = vst.msk [vmem:[%s268 + $0xa0] sm:$0xff] %vm370, %v1421
      %1725 = vst.msk [vmem:[%s268 + $0xa8] sm:$0xff] %vm370, %v1426
      %1726 = vst.msk [vmem:[%s268 + $0xb0] sm:$0xff] %vm370, %v1431
      %1727 = vst.msk [vmem:[%s268 + $0xb8] sm:$0xff] %vm370, %v1436
      %1728 = vst.msk [vmem:[%s268 + $0xc0] sm:$0xff] %vm370, %v1441
      %1729 = vst.msk [vmem:[%s268 + $0xc8] sm:$0xff] %vm370, %v1446
      %1730 = vst.msk [vmem:[%s268 + $0xd0] sm:$0xff] %vm370, %v1451
      %1731 = vst.msk [vmem:[%s268 + $0xd8] sm:$0xff] %vm370, %v1456
      %1732 = vst.msk [vmem:[%s268 + $0xe0] sm:$0xff] %vm370, %v1461
      %1733 = vst.msk [vmem:[%s268 + $0xe8] sm:$0xff] %vm370, %v1466
      %1734 = vst.msk [vmem:[%s268 + $0xf0] sm:$0xff] %vm370, %v1471
      %1735 = vst.msk [vmem:[%s268 + $0xf8] sm:$0xff] %vm370, %v1476
      %s1736 = smul.u32 32, %s18
      %p1737 = scmp.lt.s32.totalorder %s1736, 127
      %s1738 = scalar_select %p1737, %s1736, 127
      %s1739 = smul.addr %s1738, 8
      %s1740 = scalar_lea.vmem %s4, %s1739
      %s1741 = smul.u32 32, %s18
      %p1742 = scmp.lt.s32.totalorder %s1741, 127
      %s1743 = scalar_select %p1742, %s1741, 127
      %s1744 = smul.addr %s1743, 8
      %s1745 = scalar_lea.vmem %s5, %s1744
      %s1746 = smul.u32 32, %s18
      %p1747 = scmp.lt.s32.totalorder %s1746, 127
      %s1748 = scalar_select %p1747, %s1746, 127
      %s1749 = smul.addr %s1748, 8
      %s1750 = scalar_lea.vmem %s6, %s1749
      // Predicated region
      $region37: #{tpu_custom_call.1} parent=35 // pred_check
        %p1751 = pneg %p125
      $region38: #{tpu_custom_call.1} parent=35 // pred_check_branch
        %1753 = sbr.rel (%p1751) target = $region40
      $region39: #{tpu_custom_call.1} parent=35 // pred_region
        %s1754 = smul.u32 32, %s18
      $region40: #{tpu_custom_call.1} parent=35 // pred_fallthru
        _
      // Predicated region
      $region41: #{tpu_custom_call.1} parent=35 // pred_check
        %p1755 = pneg %p151
      $region42: #{tpu_custom_call.1} parent=35 // pred_check_branch
        %1757 = sbr.rel (%p1755) target = $region44
      $region43: #{tpu_custom_call.1} parent=35 // pred_region
        %s1758 = smul.u32 32, %s18
      $region44: #{tpu_custom_call.1} parent=35 // pred_fallthru
        _
      // Predicated region
      $region45: #{tpu_custom_call.1} parent=35 // pred_check
        %p1759 = pneg %p177
      $region46: #{tpu_custom_call.1} parent=35 // pred_check_branch
        %1761 = sbr.rel (%p1759) target = $region48
      $region47: #{tpu_custom_call.1} parent=35 // pred_region
        %s1762 = smul.u32 32, %s18
      $region48: #{tpu_custom_call.1} parent=35 // pred_fallthru
        _
    $region36: #{tpu_custom_call.1} parent=5 // pred_fallthru
      _
    %p1763 = scmp.le.s32.totalorder 2, %s13
    // Predicated region
    $region49: #{tpu_custom_call.1} parent=5 // pred_check
      %p1764 = pneg %p1763
    $region50: #{tpu_custom_call.1} parent=5 // pred_check_branch
      %1766 = sbr.rel (%p1764) target = $region52
    $region51: #{tpu_custom_call.1} parent=5 // pred_region
      %s1767 = ssub.s32 %s13, 2
      // Predicated region
      $region53: #{tpu_custom_call.1} parent=51 // pred_check
        %p1768 = pneg %p131
      $region54: #{tpu_custom_call.1} parent=51 // pred_check_branch
        %1770 = sbr.rel (%p1768) target = $region56
      $region55: #{tpu_custom_call.1} parent=51 // pred_region
        %s1771 = smul.u32 32, %s19
        %p1772 = scmp.lt.s32.totalorder %s1771, 127
        %s1773 = scalar_select %p1772, %s1771, 127
        %s1774 = smul.addr %s1773, 8
        %s1775 = scalar_lea.vmem %s4, %s1774
      $region56: #{tpu_custom_call.1} parent=51 // pred_fallthru
        _
      // Predicated region
      $region57: #{tpu_custom_call.1} parent=51 // pred_check
        %p1776 = pneg %p157
      $region58: #{tpu_custom_call.1} parent=51 // pred_check_branch
        %1778 = sbr.rel (%p1776) target = $region60
      $region59: #{tpu_custom_call.1} parent=51 // pred_region
        %s1779 = smul.u32 32, %s19
        %p1780 = scmp.lt.s32.totalorder %s1779, 127
        %s1781 = scalar_select %p1780, %s1779, 127
        %s1782 = smul.addr %s1781, 8
        %s1783 = scalar_lea.vmem %s5, %s1782
      $region60: #{tpu_custom_call.1} parent=51 // pred_fallthru
        _
      // Predicated region
      $region61: #{tpu_custom_call.1} parent=51 // pred_check
        %p1784 = pneg %p183
      $region62: #{tpu_custom_call.1} parent=51 // pred_check_branch
        %1786 = sbr.rel (%p1784) target = $region64
      $region63: #{tpu_custom_call.1} parent=51 // pred_region
        %s1787 = smul.u32 32, %s19
        %p1788 = scmp.lt.s32.totalorder %s1787, 127
        %s1789 = scalar_select %p1788, %s1787, 127
        %s1790 = smul.addr %s1789, 8
        %s1791 = scalar_lea.vmem %s6, %s1790
      $region64: #{tpu_custom_call.1} parent=51 // pred_fallthru
        _
    $region52: #{tpu_custom_call.1} parent=5 // pred_fallthru
      _
  $region6: #{tpu_custom_call.1} parent=0 // loop_footer
    %s17 = sadd.s32 1, %s13
  $region7: #{tpu_custom_call.1} parent=0 // loop_footer_branch
    %12 = sbr.rel target = $region3
  $region8: #{tpu_custom_call.1} parent=0 // loop_exit
    _

</llo_original>
